<compile_context>
chip_gen: v7x
topology: tpu7x:2x2x1
jax: 0.10.0
libtpu: 0.0.40
codegen_flags: <defaults>
</compile_context>

<pallas_src>
import jax
import jax.numpy as jnp
from jax.experimental import pallas as pl
from jax.experimental.pallas import tpu as pltpu

LANE = 128


def _round_up(x, m):
    return (x + m - 1) // m * m


# ----------------------------- fused Pallas kernel -----------------------------

def fused_decoder_kernel(ids_ref,      # SMEM (B,)            int32 token ids
                         emb_hbm_ref,  # ANY  (V, Din_p)      f32 embedding table (HBM)
                         wih_ref,      # VMEM (L, Din_p, 4Hp) bf16
                         whh_ref,      # VMEM (L, Hp,    4Hp) bf16
                         b_ref,        # VMEM (L, 1, 4Hp)     f32  (b_ih + b_hh)
                         fcw_ref,      # VMEM (Hp, Op)        bf16
                         fcb_ref,      # VMEM (1, Op)         f32
                         h_in_ref,     # VMEM (L, B, Hp)      f32  (aliased with h_out)
                         c_in_ref,     # VMEM (L, B, Hp)      f32  (aliased with c_out)
                         pred_ref,     # VMEM (B, Op)         f32  out
                         h_out_ref,    # VMEM (L, B, Hp)      f32  out (alias of h_in)
                         c_out_ref,    # VMEM (L, B, Hp)      f32  out (alias of c_in)
                         emb_buf,      # VMEM (B, Din_p)      f32  scratch
                         emb_sem):     # DMA semaphores (B,)
    B = pred_ref.shape[0]
    L, Din_p, _ = wih_ref.shape
    Hp = whh_ref.shape[1]

    # ---- gather only the B needed embedding rows straight from HBM ----
    copies = []
    for bi in range(B):
        row = ids_ref[bi]
        cp = pltpu.make_async_copy(emb_hbm_ref.at[pl.ds(row, 1)],
                                   emb_buf.at[pl.ds(bi, 1)],
                                   emb_sem.at[bi])
        cp.start()
        copies.append(cp)
    for cp in copies:
        cp.wait()

    # nn.Dropout is identity in eval mode.
    x_bf = emb_buf[...].astype(jnp.bfloat16)               # (B, Din_p) bf16

    # ---- L stacked LSTM layers, single time step ----
    for l in range(L):
        h_prev = h_in_ref[l]                                # (B, Hp) f32
        c_prev = c_in_ref[l]                                # (B, Hp) f32
        # Layer 0 input width is Din_p; layers > 0 input is h (width Hp).  Rows
        # of wih beyond the layer's true input dim are zero-padded at pack time.
        w_in = wih_ref[l] if l == 0 else wih_ref[l][:Hp, :]
        gates = (jnp.dot(x_bf, w_in, preferred_element_type=jnp.float32)
                 + jnp.dot(h_prev.astype(jnp.bfloat16), whh_ref[l],
                           preferred_element_type=jnp.float32)
                 + b_ref[l])                                # (B, 4*Hp) f32
        i = jax.nn.sigmoid(gates[:, 0 * Hp:1 * Hp])
        f = jax.nn.sigmoid(gates[:, 1 * Hp:2 * Hp])
        g = jnp.tanh(gates[:, 2 * Hp:3 * Hp])
        o = jax.nn.sigmoid(gates[:, 3 * Hp:4 * Hp])
        # Padded-lane invariant: gate pre-activations are exactly 0 there, so
        # c_new pad = 0.5 * c_prev_pad stays 0 as long as the caller zero-pads
        # the initial cell state; h_new pad = 0.5 * tanh(0) = 0.
        c_new = f * c_prev + i * g
        h_new = o * jnp.tanh(c_new)
        h_out_ref[l] = h_new                                # full-tile, lane-dense store
        c_out_ref[l] = c_new
        x_bf = h_new.astype(jnp.bfloat16)                   # (B, Hp) next layer input

    # ---- final Linear fused into the same kernel (lane-dense (B, Op) store) ----
    pred_ref[...] = (jnp.dot(x_bf, fcw_ref[...],
                             preferred_element_type=jnp.float32)
                     + fcb_ref[...])


# ----------------------------- pallas_call wrappers -----------------------------

def _decoder_step_padded(packed, ids, h_pad, c_pad):
    """One fused decode step on lane-padded state.

    h_pad / c_pad: (L, B, Hp) f32 with exact zeros in lanes [H:Hp].  They are
    donated (input_output_aliases) and updated in place; autoregressive loops
    should call this directly and keep feeding the padded state back (the
    padded lanes stay zero across steps).
    """
    L, B, Hp = h_pad.shape
    Din_p = packed["embedding"].shape[1]
    Op = packed["fc_w"].shape[1]

    def nbytes(a):
        return a.size * a.dtype.itemsize

    resident = (nbytes(packed["wih"]) + nbytes(packed["whh"]) + nbytes(packed["b"])
                + nbytes(packed["fc_w"]) + nbytes(packed["fc_b"])
                + 2 * nbytes(h_pad) + 2 * nbytes(c_pad)    # state in + out views
                + B * Op * 4                               # predictions
                + B * Din_p * 4)                           # embedding gather scratch
    vmem_limit = min(2 * resident + (8 << 20), 128 << 20)

    vmem = pl.BlockSpec(memory_space=pltpu.MemorySpace.VMEM)
    smem = pl.BlockSpec(memory_space=pltpu.MemorySpace.SMEM)
    anym = pl.BlockSpec(memory_space=pl.ANY)               # embedding stays in HBM

    return pl.pallas_call(
        fused_decoder_kernel,
        out_shape=(jax.ShapeDtypeStruct((B, Op), jnp.float32),
                   jax.ShapeDtypeStruct((L, B, Hp), jnp.float32),
                   jax.ShapeDtypeStruct((L, B, Hp), jnp.float32)),
        in_specs=[smem, anym, vmem, vmem, vmem, vmem, vmem, vmem, vmem],
        out_specs=(vmem, vmem, vmem),
        scratch_shapes=[pltpu.VMEM((B, Din_p), jnp.float32),
                        pltpu.SemaphoreType.DMA((B,))],
        # hidden/cell updated in place (inputs 7, 8 alias outputs 1, 2).
        input_output_aliases={7: 1, 8: 2},
        compiler_params=pltpu.CompilerParams(vmem_limit_bytes=vmem_limit),
    )(ids, packed["embedding"], packed["wih"], packed["whh"], packed["b"],
      packed["fc_w"], packed["fc_b"], h_pad, c_pad)


def decoder_forward(packed, x, hidden_state, cell_state, *, output_size):
    """Matches PyTorch Decoder.forward (eval mode, seq_len == 1)."""
    L, B, H = hidden_state.shape
    Hp = packed["whh"].shape[1]
    V = packed["embedding"].shape[0]
    # Clamp ids (jnp.take-style 'clip'); PyTorch nn.Embedding would error on OOB.
    ids = jnp.clip(x.astype(jnp.int32), 0, V - 1)
    # Zero-pad state lanes once; the kernel preserves the zero-pad invariant.
    h_pad = jnp.pad(hidden_state, ((0, 0), (0, 0), (0, Hp - H)))
    c_pad = jnp.pad(cell_state, ((0, 0), (0, 0), (0, Hp - H)))
    preds_p, h_pad, c_pad = _decoder_step_padded(packed, ids, h_pad, c_pad)
    return preds_p[:, :output_size], h_pad[:, :, :H], c_pad[:, :, :H]


decoder_forward_jit = jax.jit(decoder_forward, static_argnames=("output_size",))


# ----------------------------- parameter setup -----------------------------

def init_decoder_raw_params(key, input_size, embedding_size, hidden_size,
                            output_size, num_layers):
    """Deterministic synthetic init (PyTorch-style uniform ranges), f32."""
    keys = jax.random.split(key, 3 + 4 * num_layers)
    k_emb, k_fcw, k_fcb = keys[0], keys[1], keys[2]
    bound = 1.0 / jnp.sqrt(hidden_size)

    raw = {
        "embedding": jax.random.normal(k_emb, (input_size, embedding_size),
                                       jnp.float32),
        "fc_w_t": jax.random.uniform(k_fcw, (hidden_size, output_size),
                                     jnp.float32, -bound, bound),
        "fc_b": jax.random.uniform(k_fcb, (1, output_size),
                                   jnp.float32, -bound, bound),
        "lstm": [],
    }
    for layer in range(num_layers):
        d_in = embedding_size if layer == 0 else hidden_size
        k0, k1, k2, k3 = keys[3 + 4 * layer: 3 + 4 * layer + 4]
        w_ih_t = jax.random.uniform(k0, (d_in, 4 * hidden_size),
                                    jnp.float32, -bound, bound)
        w_hh_t = jax.random.uniform(k1, (hidden_size, 4 * hidden_size),
                                    jnp.float32, -bound, bound)
        b_ih = jax.random.uniform(k2, (1, 4 * hidden_size),
                                  jnp.float32, -bound, bound)
        b_hh = jax.random.uniform(k3, (1, 4 * hidden_size),
                                  jnp.float32, -bound, bound)
        raw["lstm"].append((w_ih_t, w_hh_t, b_ih + b_hh))
    return raw


def pack_decoder_params(raw):
    """Pack raw per-layer weights into the fused, lane-padded layout."""
    V, E = raw["embedding"].shape
    H = raw["lstm"][0][1].shape[0]          # w_hh_t: (H, 4H)
    L = len(raw["lstm"])
    O = raw["fc_w_t"].shape[1]
    Hp = _round_up(H, LANE)
    Ep = _round_up(E, LANE)
    Din_p = max(Ep, Hp)
    Op = _round_up(O, LANE)

    # Embedding columns padded to Din_p (zeros) so layer-0 input needs no runtime pad.
    emb = jnp.zeros((V, Din_p), jnp.float32).at[:, :E].set(raw["embedding"])

    wih = jnp.zeros((L, Din_p, 4 * Hp), jnp.float32)
    whh = jnp.zeros((L, Hp, 4 * Hp), jnp.float32)
    bst = jnp.zeros((L, 1, 4 * Hp), jnp.float32)
    for l, (w_ih_t, w_hh_t, bias) in enumerate(raw["lstm"]):
        d_in = w_ih_t.shape[0]
        for g in range(4):                  # gate order [i, f, g, o]
            wih = wih.at[l, :d_in, g * Hp:g * Hp + H].set(w_ih_t[:, g * H:(g + 1) * H])
            whh = whh.at[l, :H, g * Hp:g * Hp + H].set(w_hh_t[:, g * H:(g + 1) * H])
            bst = bst.at[l, :, g * Hp:g * Hp + H].set(bias[:, g * H:(g + 1) * H])

    fc_w = jnp.zeros((Hp, Op), jnp.float32).at[:H, :O].set(raw["fc_w_t"])
    fc_b = jnp.zeros((1, Op), jnp.float32).at[:, :O].set(raw["fc_b"])

    return {
        "embedding": emb,                         # f32, HBM-resident in the kernel
        "wih": wih.astype(jnp.bfloat16),
        "whh": whh.astype(jnp.bfloat16),
        "b": bst,
        "fc_w": fc_w.astype(jnp.bfloat16),
        "fc_b": fc_b,
    }


# ----------------------------- pure-JAX reference -----------------------------

def decoder_forward_ref(raw, x, hidden_state, cell_state):
    """Reference with the same bf16-weight / f32-accumulate numerics."""
    bf = jnp.bfloat16
    layer_in = jnp.take(raw["embedding"], x, axis=0)         # (B, E) f32
    H = hidden_state.shape[-1]
    new_h, new_c = [], []
    for l, (w_ih_t, w_hh_t, b) in enumerate(raw["lstm"]):
        gates = (jnp.dot(layer_in.astype(bf), w_ih_t.astype(bf),
                         preferred_element_type=jnp.float32)
                 + jnp.dot(hidden_state[l].astype(bf), w_hh_t.astype(bf),
                           preferred_element_type=jnp.float32)
                 + b)
        i = jax.nn.sigmoid(gates[:, 0 * H:1 * H])
        f = jax.nn.sigmoid(gates[:, 1 * H:2 * H])
        g = jnp.tanh(gates[:, 2 * H:3 * H])
        o = jax.nn.sigmoid(gates[:, 3 * H:4 * H])
        c_new = f * cell_state[l] + i * g
        h_new = o * jnp.tanh(c_new)
        new_h.append(h_new)
        new_c.append(c_new)
        layer_in = h_new
    preds = (jnp.dot(layer_in.astype(bf), raw["fc_w_t"].astype(bf),
                     preferred_element_type=jnp.float32) + raw["fc_b"])
    return preds, jnp.stack(new_h, 0), jnp.stack(new_c, 0)


# ----------------------------- main -----------------------------

if __name__ == "__main__":
    # Small shapes consistent with the module's forward (seq_len == 1).
    V, E, H, O, L, B = 32, 32, 32, 32, 2, 8   # vocab, embed, hidden, out, layers, batch

    key = jax.random.PRNGKey(0)
    k_params, k_x, k_h, k_c = jax.random.split(key, 4)

    raw = init_decoder_raw_params(k_params, V, E, H, O, L)
    packed = pack_decoder_params(raw)

    x = jax.random.randint(k_x, (B,), 0, V, dtype=jnp.int32)     # token ids
    h0 = jax.random.normal(k_h, (L, B, H), jnp.float32)
    c0 = jax.random.normal(k_c, (L, B, H), jnp.float32)

    preds, hidden, cell = decoder_forward_jit(packed, x, h0, c0, output_size=O)
    jax.block_until_ready((preds, hidden, cell))

    preds_ref, hidden_ref, cell_ref = decoder_forward_ref(raw, x, h0, c0)

    assert preds.shape == (B, O) and hidden.shape == (L, B, H) and cell.shape == (L, B, H)
    assert jnp.allclose(preds, preds_ref, atol=2e-3, rtol=2e-3)
    assert jnp.allclose(hidden, hidden_ref, atol=2e-3, rtol=2e-3)
    assert jnp.allclose(cell, cell_ref, atol=2e-3, rtol=2e-3)

    print("KERNEL_OK")
</pallas_src>

<mosaic_0001>
module attributes {stable_mosaic.version = 11 : i64} {
  func.func @fused_decoder_kernel(%arg0: memref<8xi32, #tpu.memory_space<smem>>, %arg1: memref<32x128xf32, #tpu.memory_space<any>>, %arg2: memref<2x128x512xbf16, #tpu.memory_space<vmem>>, %arg3: memref<2x128x512xbf16, #tpu.memory_space<vmem>>, %arg4: memref<2x1x512xf32, #tpu.memory_space<vmem>>, %arg5: memref<128x128xbf16, #tpu.memory_space<vmem>>, %arg6: memref<1x128xf32, #tpu.memory_space<vmem>>, %arg7: memref<2x8x128xf32, #tpu.memory_space<vmem>>, %arg8: memref<2x8x128xf32, #tpu.memory_space<vmem>>, %arg9: memref<8x128xf32, #tpu.memory_space<vmem>>, %arg10: memref<2x8x128xf32, #tpu.memory_space<vmem>>, %arg11: memref<2x8x128xf32, #tpu.memory_space<vmem>>, %arg12: memref<8x128xf32, #tpu.memory_space<vmem>>, %arg13: memref<8x!tpu.dma_semaphore, #tpu.memory_space<semaphore_mem>>) attributes {dimension_semantics = [], scalar_prefetch = 0 : i64, scratch_operands = 2 : i64, tpu.core_type = #tpu.core_type<tc>} {
    %c0 = arith.constant 0 : index
    %0 = memref.load %arg0[%c0] : memref<8xi32, #tpu.memory_space<smem>>
    %c0_i32 = arith.constant 0 : i32
    %c0_i32_0 = arith.constant 0 : i32
    %1 = tpu.memref_slice %arg1[%0, %c0_i32_0] : memref<32x128xf32, #tpu.memory_space<any>> -> memref<1x128xf32, #tpu.memory_space<any>>
    %c0_i32_1 = arith.constant 0 : i32
    %c0_i32_2 = arith.constant 0 : i32
    %2 = tpu.memref_slice %arg12[%c0_i32_1, %c0_i32_2] : memref<8x128xf32, #tpu.memory_space<vmem>> -> memref<1x128xf32, #tpu.memory_space<vmem>>
    %3 = tpu.memref_slice %arg13[%c0_i32] : memref<8x!tpu.dma_semaphore, #tpu.memory_space<semaphore_mem>> -> memref<1x!tpu.dma_semaphore, #tpu.memory_space<semaphore_mem>>
    %4 = tpu.memref_squeeze %3 : memref<1x!tpu.dma_semaphore, #tpu.memory_space<semaphore_mem>> -> memref<!tpu.dma_semaphore, #tpu.memory_space<semaphore_mem>>
    tpu.enqueue_dma source(%1 : memref<1x128xf32, #tpu.memory_space<any>>) target(%2 : memref<1x128xf32, #tpu.memory_space<vmem>>) target_semaphore(%4 : memref<!tpu.dma_semaphore, #tpu.memory_space<semaphore_mem>>)
    %c1 = arith.constant 1 : index
    %5 = memref.load %arg0[%c1] : memref<8xi32, #tpu.memory_space<smem>>
    %c1_i32 = arith.constant 1 : i32
    %c0_i32_3 = arith.constant 0 : i32
    %6 = tpu.memref_slice %arg1[%5, %c0_i32_3] : memref<32x128xf32, #tpu.memory_space<any>> -> memref<1x128xf32, #tpu.memory_space<any>>
    %c1_i32_4 = arith.constant 1 : i32
    %c0_i32_5 = arith.constant 0 : i32
    %7 = tpu.memref_slice %arg12[%c1_i32_4, %c0_i32_5] : memref<8x128xf32, #tpu.memory_space<vmem>> -> memref<1x128xf32, #tpu.memory_space<vmem>>
    %8 = tpu.memref_slice %arg13[%c1_i32] : memref<8x!tpu.dma_semaphore, #tpu.memory_space<semaphore_mem>> -> memref<1x!tpu.dma_semaphore, #tpu.memory_space<semaphore_mem>>
    %9 = tpu.memref_squeeze %8 : memref<1x!tpu.dma_semaphore, #tpu.memory_space<semaphore_mem>> -> memref<!tpu.dma_semaphore, #tpu.memory_space<semaphore_mem>>
    tpu.enqueue_dma source(%6 : memref<1x128xf32, #tpu.memory_space<any>>) target(%7 : memref<1x128xf32, #tpu.memory_space<vmem>>) target_semaphore(%9 : memref<!tpu.dma_semaphore, #tpu.memory_space<semaphore_mem>>)
    %c2 = arith.constant 2 : index
    %10 = memref.load %arg0[%c2] : memref<8xi32, #tpu.memory_space<smem>>
    %c2_i32 = arith.constant 2 : i32
    %c0_i32_6 = arith.constant 0 : i32
    %11 = tpu.memref_slice %arg1[%10, %c0_i32_6] : memref<32x128xf32, #tpu.memory_space<any>> -> memref<1x128xf32, #tpu.memory_space<any>>
    %c2_i32_7 = arith.constant 2 : i32
    %c0_i32_8 = arith.constant 0 : i32
    %12 = tpu.memref_slice %arg12[%c2_i32_7, %c0_i32_8] : memref<8x128xf32, #tpu.memory_space<vmem>> -> memref<1x128xf32, #tpu.memory_space<vmem>>
    %13 = tpu.memref_slice %arg13[%c2_i32] : memref<8x!tpu.dma_semaphore, #tpu.memory_space<semaphore_mem>> -> memref<1x!tpu.dma_semaphore, #tpu.memory_space<semaphore_mem>>
    %14 = tpu.memref_squeeze %13 : memref<1x!tpu.dma_semaphore, #tpu.memory_space<semaphore_mem>> -> memref<!tpu.dma_semaphore, #tpu.memory_space<semaphore_mem>>
    tpu.enqueue_dma source(%11 : memref<1x128xf32, #tpu.memory_space<any>>) target(%12 : memref<1x128xf32, #tpu.memory_space<vmem>>) target_semaphore(%14 : memref<!tpu.dma_semaphore, #tpu.memory_space<semaphore_mem>>)
    %c3 = arith.constant 3 : index
    %15 = memref.load %arg0[%c3] : memref<8xi32, #tpu.memory_space<smem>>
    %c3_i32 = arith.constant 3 : i32
    %c0_i32_9 = arith.constant 0 : i32
    %16 = tpu.memref_slice %arg1[%15, %c0_i32_9] : memref<32x128xf32, #tpu.memory_space<any>> -> memref<1x128xf32, #tpu.memory_space<any>>
    %c3_i32_10 = arith.constant 3 : i32
    %c0_i32_11 = arith.constant 0 : i32
    %17 = tpu.memref_slice %arg12[%c3_i32_10, %c0_i32_11] : memref<8x128xf32, #tpu.memory_space<vmem>> -> memref<1x128xf32, #tpu.memory_space<vmem>>
    %18 = tpu.memref_slice %arg13[%c3_i32] : memref<8x!tpu.dma_semaphore, #tpu.memory_space<semaphore_mem>> -> memref<1x!tpu.dma_semaphore, #tpu.memory_space<semaphore_mem>>
    %19 = tpu.memref_squeeze %18 : memref<1x!tpu.dma_semaphore, #tpu.memory_space<semaphore_mem>> -> memref<!tpu.dma_semaphore, #tpu.memory_space<semaphore_mem>>
    tpu.enqueue_dma source(%16 : memref<1x128xf32, #tpu.memory_space<any>>) target(%17 : memref<1x128xf32, #tpu.memory_space<vmem>>) target_semaphore(%19 : memref<!tpu.dma_semaphore, #tpu.memory_space<semaphore_mem>>)
    %c4 = arith.constant 4 : index
    %20 = memref.load %arg0[%c4] : memref<8xi32, #tpu.memory_space<smem>>
    %c4_i32 = arith.constant 4 : i32
    %c0_i32_12 = arith.constant 0 : i32
    %21 = tpu.memref_slice %arg1[%20, %c0_i32_12] : memref<32x128xf32, #tpu.memory_space<any>> -> memref<1x128xf32, #tpu.memory_space<any>>
    %c4_i32_13 = arith.constant 4 : i32
    %c0_i32_14 = arith.constant 0 : i32
    %22 = tpu.memref_slice %arg12[%c4_i32_13, %c0_i32_14] : memref<8x128xf32, #tpu.memory_space<vmem>> -> memref<1x128xf32, #tpu.memory_space<vmem>>
    %23 = tpu.memref_slice %arg13[%c4_i32] : memref<8x!tpu.dma_semaphore, #tpu.memory_space<semaphore_mem>> -> memref<1x!tpu.dma_semaphore, #tpu.memory_space<semaphore_mem>>
    %24 = tpu.memref_squeeze %23 : memref<1x!tpu.dma_semaphore, #tpu.memory_space<semaphore_mem>> -> memref<!tpu.dma_semaphore, #tpu.memory_space<semaphore_mem>>
    tpu.enqueue_dma source(%21 : memref<1x128xf32, #tpu.memory_space<any>>) target(%22 : memref<1x128xf32, #tpu.memory_space<vmem>>) target_semaphore(%24 : memref<!tpu.dma_semaphore, #tpu.memory_space<semaphore_mem>>)
    %c5 = arith.constant 5 : index
    %25 = memref.load %arg0[%c5] : memref<8xi32, #tpu.memory_space<smem>>
    %c5_i32 = arith.constant 5 : i32
    %c0_i32_15 = arith.constant 0 : i32
    %26 = tpu.memref_slice %arg1[%25, %c0_i32_15] : memref<32x128xf32, #tpu.memory_space<any>> -> memref<1x128xf32, #tpu.memory_space<any>>
    %c5_i32_16 = arith.constant 5 : i32
    %c0_i32_17 = arith.constant 0 : i32
    %27 = tpu.memref_slice %arg12[%c5_i32_16, %c0_i32_17] : memref<8x128xf32, #tpu.memory_space<vmem>> -> memref<1x128xf32, #tpu.memory_space<vmem>>
    %28 = tpu.memref_slice %arg13[%c5_i32] : memref<8x!tpu.dma_semaphore, #tpu.memory_space<semaphore_mem>> -> memref<1x!tpu.dma_semaphore, #tpu.memory_space<semaphore_mem>>
    %29 = tpu.memref_squeeze %28 : memref<1x!tpu.dma_semaphore, #tpu.memory_space<semaphore_mem>> -> memref<!tpu.dma_semaphore, #tpu.memory_space<semaphore_mem>>
    tpu.enqueue_dma source(%26 : memref<1x128xf32, #tpu.memory_space<any>>) target(%27 : memref<1x128xf32, #tpu.memory_space<vmem>>) target_semaphore(%29 : memref<!tpu.dma_semaphore, #tpu.memory_space<semaphore_mem>>)
    %c6 = arith.constant 6 : index
    %30 = memref.load %arg0[%c6] : memref<8xi32, #tpu.memory_space<smem>>
    %c6_i32 = arith.constant 6 : i32
    %c0_i32_18 = arith.constant 0 : i32
    %31 = tpu.memref_slice %arg1[%30, %c0_i32_18] : memref<32x128xf32, #tpu.memory_space<any>> -> memref<1x128xf32, #tpu.memory_space<any>>
    %c6_i32_19 = arith.constant 6 : i32
    %c0_i32_20 = arith.constant 0 : i32
    %32 = tpu.memref_slice %arg12[%c6_i32_19, %c0_i32_20] : memref<8x128xf32, #tpu.memory_space<vmem>> -> memref<1x128xf32, #tpu.memory_space<vmem>>
    %33 = tpu.memref_slice %arg13[%c6_i32] : memref<8x!tpu.dma_semaphore, #tpu.memory_space<semaphore_mem>> -> memref<1x!tpu.dma_semaphore, #tpu.memory_space<semaphore_mem>>
    %34 = tpu.memref_squeeze %33 : memref<1x!tpu.dma_semaphore, #tpu.memory_space<semaphore_mem>> -> memref<!tpu.dma_semaphore, #tpu.memory_space<semaphore_mem>>
    tpu.enqueue_dma source(%31 : memref<1x128xf32, #tpu.memory_space<any>>) target(%32 : memref<1x128xf32, #tpu.memory_space<vmem>>) target_semaphore(%34 : memref<!tpu.dma_semaphore, #tpu.memory_space<semaphore_mem>>)
    %c7 = arith.constant 7 : index
    %35 = memref.load %arg0[%c7] : memref<8xi32, #tpu.memory_space<smem>>
    %c7_i32 = arith.constant 7 : i32
    %c0_i32_21 = arith.constant 0 : i32
    %36 = tpu.memref_slice %arg1[%35, %c0_i32_21] : memref<32x128xf32, #tpu.memory_space<any>> -> memref<1x128xf32, #tpu.memory_space<any>>
    %c7_i32_22 = arith.constant 7 : i32
    %c0_i32_23 = arith.constant 0 : i32
    %37 = tpu.memref_slice %arg12[%c7_i32_22, %c0_i32_23] : memref<8x128xf32, #tpu.memory_space<vmem>> -> memref<1x128xf32, #tpu.memory_space<vmem>>
    %38 = tpu.memref_slice %arg13[%c7_i32] : memref<8x!tpu.dma_semaphore, #tpu.memory_space<semaphore_mem>> -> memref<1x!tpu.dma_semaphore, #tpu.memory_space<semaphore_mem>>
    %39 = tpu.memref_squeeze %38 : memref<1x!tpu.dma_semaphore, #tpu.memory_space<semaphore_mem>> -> memref<!tpu.dma_semaphore, #tpu.memory_space<semaphore_mem>>
    tpu.enqueue_dma source(%36 : memref<1x128xf32, #tpu.memory_space<any>>) target(%37 : memref<1x128xf32, #tpu.memory_space<vmem>>) target_semaphore(%39 : memref<!tpu.dma_semaphore, #tpu.memory_space<semaphore_mem>>)
    %c0_i32_24 = arith.constant 0 : i32
    %c0_i32_25 = arith.constant 0 : i32
    %40 = tpu.memref_slice %arg1[%0, %c0_i32_25] : memref<32x128xf32, #tpu.memory_space<any>> -> memref<1x128xf32, #tpu.memory_space<any>>
    %c0_i32_26 = arith.constant 0 : i32
    %c0_i32_27 = arith.constant 0 : i32
    %41 = tpu.memref_slice %arg12[%c0_i32_26, %c0_i32_27] : memref<8x128xf32, #tpu.memory_space<vmem>> -> memref<1x128xf32, #tpu.memory_space<vmem>>
    %42 = tpu.memref_slice %arg13[%c0_i32_24] : memref<8x!tpu.dma_semaphore, #tpu.memory_space<semaphore_mem>> -> memref<1x!tpu.dma_semaphore, #tpu.memory_space<semaphore_mem>>
    %43 = tpu.memref_squeeze %42 : memref<1x!tpu.dma_semaphore, #tpu.memory_space<semaphore_mem>> -> memref<!tpu.dma_semaphore, #tpu.memory_space<semaphore_mem>>
    tpu.wait_dma2 semaphore(%43 : memref<!tpu.dma_semaphore, #tpu.memory_space<semaphore_mem>>) src(%40 : memref<1x128xf32, #tpu.memory_space<any>>) dst(%41 : memref<1x128xf32, #tpu.memory_space<vmem>>)
    %c1_i32_28 = arith.constant 1 : i32
    %c0_i32_29 = arith.constant 0 : i32
    %44 = tpu.memref_slice %arg1[%5, %c0_i32_29] : memref<32x128xf32, #tpu.memory_space<any>> -> memref<1x128xf32, #tpu.memory_space<any>>
    %c1_i32_30 = arith.constant 1 : i32
    %c0_i32_31 = arith.constant 0 : i32
    %45 = tpu.memref_slice %arg12[%c1_i32_30, %c0_i32_31] : memref<8x128xf32, #tpu.memory_space<vmem>> -> memref<1x128xf32, #tpu.memory_space<vmem>>
    %46 = tpu.memref_slice %arg13[%c1_i32_28] : memref<8x!tpu.dma_semaphore, #tpu.memory_space<semaphore_mem>> -> memref<1x!tpu.dma_semaphore, #tpu.memory_space<semaphore_mem>>
    %47 = tpu.memref_squeeze %46 : memref<1x!tpu.dma_semaphore, #tpu.memory_space<semaphore_mem>> -> memref<!tpu.dma_semaphore, #tpu.memory_space<semaphore_mem>>
    tpu.wait_dma2 semaphore(%47 : memref<!tpu.dma_semaphore, #tpu.memory_space<semaphore_mem>>) src(%44 : memref<1x128xf32, #tpu.memory_space<any>>) dst(%45 : memref<1x128xf32, #tpu.memory_space<vmem>>)
    %c2_i32_32 = arith.constant 2 : i32
    %c0_i32_33 = arith.constant 0 : i32
    %48 = tpu.memref_slice %arg1[%10, %c0_i32_33] : memref<32x128xf32, #tpu.memory_space<any>> -> memref<1x128xf32, #tpu.memory_space<any>>
    %c2_i32_34 = arith.constant 2 : i32
    %c0_i32_35 = arith.constant 0 : i32
    %49 = tpu.memref_slice %arg12[%c2_i32_34, %c0_i32_35] : memref<8x128xf32, #tpu.memory_space<vmem>> -> memref<1x128xf32, #tpu.memory_space<vmem>>
    %50 = tpu.memref_slice %arg13[%c2_i32_32] : memref<8x!tpu.dma_semaphore, #tpu.memory_space<semaphore_mem>> -> memref<1x!tpu.dma_semaphore, #tpu.memory_space<semaphore_mem>>
    %51 = tpu.memref_squeeze %50 : memref<1x!tpu.dma_semaphore, #tpu.memory_space<semaphore_mem>> -> memref<!tpu.dma_semaphore, #tpu.memory_space<semaphore_mem>>
    tpu.wait_dma2 semaphore(%51 : memref<!tpu.dma_semaphore, #tpu.memory_space<semaphore_mem>>) src(%48 : memref<1x128xf32, #tpu.memory_space<any>>) dst(%49 : memref<1x128xf32, #tpu.memory_space<vmem>>)
    %c3_i32_36 = arith.constant 3 : i32
    %c0_i32_37 = arith.constant 0 : i32
    %52 = tpu.memref_slice %arg1[%15, %c0_i32_37] : memref<32x128xf32, #tpu.memory_space<any>> -> memref<1x128xf32, #tpu.memory_space<any>>
    %c3_i32_38 = arith.constant 3 : i32
    %c0_i32_39 = arith.constant 0 : i32
    %53 = tpu.memref_slice %arg12[%c3_i32_38, %c0_i32_39] : memref<8x128xf32, #tpu.memory_space<vmem>> -> memref<1x128xf32, #tpu.memory_space<vmem>>
    %54 = tpu.memref_slice %arg13[%c3_i32_36] : memref<8x!tpu.dma_semaphore, #tpu.memory_space<semaphore_mem>> -> memref<1x!tpu.dma_semaphore, #tpu.memory_space<semaphore_mem>>
    %55 = tpu.memref_squeeze %54 : memref<1x!tpu.dma_semaphore, #tpu.memory_space<semaphore_mem>> -> memref<!tpu.dma_semaphore, #tpu.memory_space<semaphore_mem>>
    tpu.wait_dma2 semaphore(%55 : memref<!tpu.dma_semaphore, #tpu.memory_space<semaphore_mem>>) src(%52 : memref<1x128xf32, #tpu.memory_space<any>>) dst(%53 : memref<1x128xf32, #tpu.memory_space<vmem>>)
    %c4_i32_40 = arith.constant 4 : i32
    %c0_i32_41 = arith.constant 0 : i32
    %56 = tpu.memref_slice %arg1[%20, %c0_i32_41] : memref<32x128xf32, #tpu.memory_space<any>> -> memref<1x128xf32, #tpu.memory_space<any>>
    %c4_i32_42 = arith.constant 4 : i32
    %c0_i32_43 = arith.constant 0 : i32
    %57 = tpu.memref_slice %arg12[%c4_i32_42, %c0_i32_43] : memref<8x128xf32, #tpu.memory_space<vmem>> -> memref<1x128xf32, #tpu.memory_space<vmem>>
    %58 = tpu.memref_slice %arg13[%c4_i32_40] : memref<8x!tpu.dma_semaphore, #tpu.memory_space<semaphore_mem>> -> memref<1x!tpu.dma_semaphore, #tpu.memory_space<semaphore_mem>>
    %59 = tpu.memref_squeeze %58 : memref<1x!tpu.dma_semaphore, #tpu.memory_space<semaphore_mem>> -> memref<!tpu.dma_semaphore, #tpu.memory_space<semaphore_mem>>
    tpu.wait_dma2 semaphore(%59 : memref<!tpu.dma_semaphore, #tpu.memory_space<semaphore_mem>>) src(%56 : memref<1x128xf32, #tpu.memory_space<any>>) dst(%57 : memref<1x128xf32, #tpu.memory_space<vmem>>)
    %c5_i32_44 = arith.constant 5 : i32
    %c0_i32_45 = arith.constant 0 : i32
    %60 = tpu.memref_slice %arg1[%25, %c0_i32_45] : memref<32x128xf32, #tpu.memory_space<any>> -> memref<1x128xf32, #tpu.memory_space<any>>
    %c5_i32_46 = arith.constant 5 : i32
    %c0_i32_47 = arith.constant 0 : i32
    %61 = tpu.memref_slice %arg12[%c5_i32_46, %c0_i32_47] : memref<8x128xf32, #tpu.memory_space<vmem>> -> memref<1x128xf32, #tpu.memory_space<vmem>>
    %62 = tpu.memref_slice %arg13[%c5_i32_44] : memref<8x!tpu.dma_semaphore, #tpu.memory_space<semaphore_mem>> -> memref<1x!tpu.dma_semaphore, #tpu.memory_space<semaphore_mem>>
    %63 = tpu.memref_squeeze %62 : memref<1x!tpu.dma_semaphore, #tpu.memory_space<semaphore_mem>> -> memref<!tpu.dma_semaphore, #tpu.memory_space<semaphore_mem>>
    tpu.wait_dma2 semaphore(%63 : memref<!tpu.dma_semaphore, #tpu.memory_space<semaphore_mem>>) src(%60 : memref<1x128xf32, #tpu.memory_space<any>>) dst(%61 : memref<1x128xf32, #tpu.memory_space<vmem>>)
    %c6_i32_48 = arith.constant 6 : i32
    %c0_i32_49 = arith.constant 0 : i32
    %64 = tpu.memref_slice %arg1[%30, %c0_i32_49] : memref<32x128xf32, #tpu.memory_space<any>> -> memref<1x128xf32, #tpu.memory_space<any>>
    %c6_i32_50 = arith.constant 6 : i32
    %c0_i32_51 = arith.constant 0 : i32
    %65 = tpu.memref_slice %arg12[%c6_i32_50, %c0_i32_51] : memref<8x128xf32, #tpu.memory_space<vmem>> -> memref<1x128xf32, #tpu.memory_space<vmem>>
    %66 = tpu.memref_slice %arg13[%c6_i32_48] : memref<8x!tpu.dma_semaphore, #tpu.memory_space<semaphore_mem>> -> memref<1x!tpu.dma_semaphore, #tpu.memory_space<semaphore_mem>>
    %67 = tpu.memref_squeeze %66 : memref<1x!tpu.dma_semaphore, #tpu.memory_space<semaphore_mem>> -> memref<!tpu.dma_semaphore, #tpu.memory_space<semaphore_mem>>
    tpu.wait_dma2 semaphore(%67 : memref<!tpu.dma_semaphore, #tpu.memory_space<semaphore_mem>>) src(%64 : memref<1x128xf32, #tpu.memory_space<any>>) dst(%65 : memref<1x128xf32, #tpu.memory_space<vmem>>)
    %c7_i32_52 = arith.constant 7 : i32
    %c0_i32_53 = arith.constant 0 : i32
    %68 = tpu.memref_slice %arg1[%35, %c0_i32_53] : memref<32x128xf32, #tpu.memory_space<any>> -> memref<1x128xf32, #tpu.memory_space<any>>
    %c7_i32_54 = arith.constant 7 : i32
    %c0_i32_55 = arith.constant 0 : i32
    %69 = tpu.memref_slice %arg12[%c7_i32_54, %c0_i32_55] : memref<8x128xf32, #tpu.memory_space<vmem>> -> memref<1x128xf32, #tpu.memory_space<vmem>>
    %70 = tpu.memref_slice %arg13[%c7_i32_52] : memref<8x!tpu.dma_semaphore, #tpu.memory_space<semaphore_mem>> -> memref<1x!tpu.dma_semaphore, #tpu.memory_space<semaphore_mem>>
    %71 = tpu.memref_squeeze %70 : memref<1x!tpu.dma_semaphore, #tpu.memory_space<semaphore_mem>> -> memref<!tpu.dma_semaphore, #tpu.memory_space<semaphore_mem>>
    tpu.wait_dma2 semaphore(%71 : memref<!tpu.dma_semaphore, #tpu.memory_space<semaphore_mem>>) src(%68 : memref<1x128xf32, #tpu.memory_space<any>>) dst(%69 : memref<1x128xf32, #tpu.memory_space<vmem>>)
    %c0_56 = arith.constant 0 : index
    %c0_57 = arith.constant 0 : index
    %72 = vector.load %arg12[%c0_56, %c0_57] : memref<8x128xf32, #tpu.memory_space<vmem>>, vector<8x128xf32>
    %73 = arith.truncf %72 : vector<8x128xf32> to vector<8x128xbf16>
    %c0_58 = arith.constant 0 : index
    %c0_59 = arith.constant 0 : index
    %c0_60 = arith.constant 0 : index
    %74 = vector.load %arg7[%c0_58, %c0_59, %c0_60] : memref<2x8x128xf32, #tpu.memory_space<vmem>>, vector<1x8x128xf32>
    %75 = vector.shape_cast %74 : vector<1x8x128xf32> to vector<8x128xf32>
    %c0_61 = arith.constant 0 : index
    %c0_62 = arith.constant 0 : index
    %c0_63 = arith.constant 0 : index
    %76 = vector.load %arg8[%c0_61, %c0_62, %c0_63] : memref<2x8x128xf32, #tpu.memory_space<vmem>>, vector<1x8x128xf32>
    %77 = vector.shape_cast %76 : vector<1x8x128xf32> to vector<8x128xf32>
    %c0_64 = arith.constant 0 : index
    %c0_65 = arith.constant 0 : index
    %c0_66 = arith.constant 0 : index
    %78 = vector.load %arg2[%c0_64, %c0_65, %c0_66] : memref<2x128x512xbf16, #tpu.memory_space<vmem>>, vector<1x128x512xbf16>
    %79 = vector.shape_cast %78 : vector<1x128x512xbf16> to vector<128x512xbf16>
    %cst = arith.constant dense<0.000000e+00> : vector<8x512xf32>
    %80 = tpu.matmul %73, %79, %cst {dimension_numbers = #tpu.dot_dimension_numbers<[1], [0], [0], [1], [0, 0, 1, 1], [], []>} : vector<8x128xbf16>, vector<128x512xbf16>, vector<8x512xf32> -> vector<8x512xf32>
    %81 = arith.truncf %75 : vector<8x128xf32> to vector<8x128xbf16>
    %c0_67 = arith.constant 0 : index
    %c0_68 = arith.constant 0 : index
    %c0_69 = arith.constant 0 : index
    %82 = vector.load %arg3[%c0_67, %c0_68, %c0_69] : memref<2x128x512xbf16, #tpu.memory_space<vmem>>, vector<1x128x512xbf16>
    %83 = vector.shape_cast %82 : vector<1x128x512xbf16> to vector<128x512xbf16>
    %cst_70 = arith.constant dense<0.000000e+00> : vector<8x512xf32>
    %84 = tpu.matmul %81, %83, %cst_70 {dimension_numbers = #tpu.dot_dimension_numbers<[1], [0], [0], [1], [0, 0, 1, 1], [], []>} : vector<8x128xbf16>, vector<128x512xbf16>, vector<8x512xf32> -> vector<8x512xf32>
    %85 = arith.addf %80, %84 : vector<8x512xf32>
    %c0_71 = arith.constant 0 : index
    %c0_72 = arith.constant 0 : index
    %c0_73 = arith.constant 0 : index
    %86 = vector.load %arg4[%c0_71, %c0_72, %c0_73] : memref<2x1x512xf32, #tpu.memory_space<vmem>>, vector<1x1x512xf32>
    %87 = vector.shape_cast %86 : vector<1x1x512xf32> to vector<1x512xf32>
    %88 = vector.broadcast %87 : vector<1x512xf32> to vector<8x512xf32>
    %89 = arith.addf %85, %88 : vector<8x512xf32>
    %90 = vector.extract_strided_slice %89 {offsets = [0, 0], sizes = [8, 128], strides = [1, 1]} : vector<8x512xf32> to vector<8x128xf32>
    %91 = arith.negf %90 : vector<8x128xf32>
    %92 = math.exp %91 : vector<8x128xf32>
    %cst_74 = arith.constant 1.000000e+00 : f32
    %93 = vector.broadcast %cst_74 : f32 to vector<8x128xf32>
    %94 = arith.addf %93, %92 : vector<8x128xf32>
    %95 = arith.divf %93, %94 : vector<8x128xf32>
    %96 = vector.extract_strided_slice %89 {offsets = [0, 128], sizes = [8, 128], strides = [1, 1]} : vector<8x512xf32> to vector<8x128xf32>
    %97 = arith.negf %96 : vector<8x128xf32>
    %98 = math.exp %97 : vector<8x128xf32>
    %cst_75 = arith.constant 1.000000e+00 : f32
    %99 = vector.broadcast %cst_75 : f32 to vector<8x128xf32>
    %100 = arith.addf %99, %98 : vector<8x128xf32>
    %101 = arith.divf %99, %100 : vector<8x128xf32>
    %102 = vector.extract_strided_slice %89 {offsets = [0, 256], sizes = [8, 128], strides = [1, 1]} : vector<8x512xf32> to vector<8x128xf32>
    %103 = math.tanh %102 : vector<8x128xf32>
    %104 = vector.extract_strided_slice %89 {offsets = [0, 384], sizes = [8, 128], strides = [1, 1]} : vector<8x512xf32> to vector<8x128xf32>
    %105 = arith.negf %104 : vector<8x128xf32>
    %106 = math.exp %105 : vector<8x128xf32>
    %cst_76 = arith.constant 1.000000e+00 : f32
    %107 = vector.broadcast %cst_76 : f32 to vector<8x128xf32>
    %108 = arith.addf %107, %106 : vector<8x128xf32>
    %109 = arith.divf %107, %108 : vector<8x128xf32>
    %110 = arith.mulf %101, %77 : vector<8x128xf32>
    %111 = arith.mulf %95, %103 : vector<8x128xf32>
    %112 = arith.addf %110, %111 : vector<8x128xf32>
    %113 = math.tanh %112 : vector<8x128xf32>
    %114 = arith.mulf %109, %113 : vector<8x128xf32>
    %c0_77 = arith.constant 0 : index
    %c0_78 = arith.constant 0 : index
    %c0_79 = arith.constant 0 : index
    %115 = vector.load %arg10[%c0_77, %c0_78, %c0_79] : memref<2x8x128xf32, #tpu.memory_space<vmem>>, vector<1x8x128xf32>
    %116 = vector.shape_cast %115 : vector<1x8x128xf32> to vector<8x128xf32>
    %117 = vector.shape_cast %114 : vector<8x128xf32> to vector<1x8x128xf32>
    tpu.vector_store %arg10[%c0_77, %c0_78, %c0_79], %117 {strides = array<i32>} : memref<2x8x128xf32, #tpu.memory_space<vmem>>, vector<1x8x128xf32>,
    %c0_80 = arith.constant 0 : index
    %c0_81 = arith.constant 0 : index
    %c0_82 = arith.constant 0 : index
    %118 = vector.load %arg11[%c0_80, %c0_81, %c0_82] : memref<2x8x128xf32, #tpu.memory_space<vmem>>, vector<1x8x128xf32>
    %119 = vector.shape_cast %118 : vector<1x8x128xf32> to vector<8x128xf32>
    %120 = vector.shape_cast %112 : vector<8x128xf32> to vector<1x8x128xf32>
    tpu.vector_store %arg11[%c0_80, %c0_81, %c0_82], %120 {strides = array<i32>} : memref<2x8x128xf32, #tpu.memory_space<vmem>>, vector<1x8x128xf32>,
    %121 = arith.truncf %114 : vector<8x128xf32> to vector<8x128xbf16>
    %c1_83 = arith.constant 1 : index
    %c0_84 = arith.constant 0 : index
    %c0_85 = arith.constant 0 : index
    %122 = vector.load %arg7[%c1_83, %c0_84, %c0_85] : memref<2x8x128xf32, #tpu.memory_space<vmem>>, vector<1x8x128xf32>
    %123 = vector.shape_cast %122 : vector<1x8x128xf32> to vector<8x128xf32>
    %c1_86 = arith.constant 1 : index
    %c0_87 = arith.constant 0 : index
    %c0_88 = arith.constant 0 : index
    %124 = vector.load %arg8[%c1_86, %c0_87, %c0_88] : memref<2x8x128xf32, #tpu.memory_space<vmem>>, vector<1x8x128xf32>
    %125 = vector.shape_cast %124 : vector<1x8x128xf32> to vector<8x128xf32>
    %c1_89 = arith.constant 1 : index
    %c0_90 = arith.constant 0 : index
    %c0_91 = arith.constant 0 : index
    %126 = vector.load %arg2[%c1_89, %c0_90, %c0_91] : memref<2x128x512xbf16, #tpu.memory_space<vmem>>, vector<1x128x512xbf16>
    %127 = vector.shape_cast %126 : vector<1x128x512xbf16> to vector<128x512xbf16>
    %cst_92 = arith.constant dense<0.000000e+00> : vector<8x512xf32>
    %128 = tpu.matmul %121, %127, %cst_92 {dimension_numbers = #tpu.dot_dimension_numbers<[1], [0], [0], [1], [0, 0, 1, 1], [], []>} : vector<8x128xbf16>, vector<128x512xbf16>, vector<8x512xf32> -> vector<8x512xf32>
    %129 = arith.truncf %123 : vector<8x128xf32> to vector<8x128xbf16>
    %c1_93 = arith.constant 1 : index
    %c0_94 = arith.constant 0 : index
    %c0_95 = arith.constant 0 : index
    %130 = vector.load %arg3[%c1_93, %c0_94, %c0_95] : memref<2x128x512xbf16, #tpu.memory_space<vmem>>, vector<1x128x512xbf16>
    %131 = vector.shape_cast %130 : vector<1x128x512xbf16> to vector<128x512xbf16>
    %cst_96 = arith.constant dense<0.000000e+00> : vector<8x512xf32>
    %132 = tpu.matmul %129, %131, %cst_96 {dimension_numbers = #tpu.dot_dimension_numbers<[1], [0], [0], [1], [0, 0, 1, 1], [], []>} : vector<8x128xbf16>, vector<128x512xbf16>, vector<8x512xf32> -> vector<8x512xf32>
    %133 = arith.addf %128, %132 : vector<8x512xf32>
    %c1_97 = arith.constant 1 : index
    %c0_98 = arith.constant 0 : index
    %c0_99 = arith.constant 0 : index
    %134 = vector.load %arg4[%c1_97, %c0_98, %c0_99] : memref<2x1x512xf32, #tpu.memory_space<vmem>>, vector<1x1x512xf32>
    %135 = vector.shape_cast %134 : vector<1x1x512xf32> to vector<1x512xf32>
    %136 = vector.broadcast %135 : vector<1x512xf32> to vector<8x512xf32>
    %137 = arith.addf %133, %136 : vector<8x512xf32>
    %138 = vector.extract_strided_slice %137 {offsets = [0, 0], sizes = [8, 128], strides = [1, 1]} : vector<8x512xf32> to vector<8x128xf32>
    %139 = arith.negf %138 : vector<8x128xf32>
    %140 = math.exp %139 : vector<8x128xf32>
    %cst_100 = arith.constant 1.000000e+00 : f32
    %141 = vector.broadcast %cst_100 : f32 to vector<8x128xf32>
    %142 = arith.addf %141, %140 : vector<8x128xf32>
    %143 = arith.divf %141, %142 : vector<8x128xf32>
    %144 = vector.extract_strided_slice %137 {offsets = [0, 128], sizes = [8, 128], strides = [1, 1]} : vector<8x512xf32> to vector<8x128xf32>
    %145 = arith.negf %144 : vector<8x128xf32>
    %146 = math.exp %145 : vector<8x128xf32>
    %cst_101 = arith.constant 1.000000e+00 : f32
    %147 = vector.broadcast %cst_101 : f32 to vector<8x128xf32>
    %148 = arith.addf %147, %146 : vector<8x128xf32>
    %149 = arith.divf %147, %148 : vector<8x128xf32>
    %150 = vector.extract_strided_slice %137 {offsets = [0, 256], sizes = [8, 128], strides = [1, 1]} : vector<8x512xf32> to vector<8x128xf32>
    %151 = math.tanh %150 : vector<8x128xf32>
    %152 = vector.extract_strided_slice %137 {offsets = [0, 384], sizes = [8, 128], strides = [1, 1]} : vector<8x512xf32> to vector<8x128xf32>
    %153 = arith.negf %152 : vector<8x128xf32>
    %154 = math.exp %153 : vector<8x128xf32>
    %cst_102 = arith.constant 1.000000e+00 : f32
    %155 = vector.broadcast %cst_102 : f32 to vector<8x128xf32>
    %156 = arith.addf %155, %154 : vector<8x128xf32>
    %157 = arith.divf %155, %156 : vector<8x128xf32>
    %158 = arith.mulf %149, %125 : vector<8x128xf32>
    %159 = arith.mulf %143, %151 : vector<8x128xf32>
    %160 = arith.addf %158, %159 : vector<8x128xf32>
    %161 = math.tanh %160 : vector<8x128xf32>
    %162 = arith.mulf %157, %161 : vector<8x128xf32>
    %c1_103 = arith.constant 1 : index
    %c0_104 = arith.constant 0 : index
    %c0_105 = arith.constant 0 : index
    %163 = vector.load %arg10[%c1_103, %c0_104, %c0_105] : memref<2x8x128xf32, #tpu.memory_space<vmem>>, vector<1x8x128xf32>
    %164 = vector.shape_cast %163 : vector<1x8x128xf32> to vector<8x128xf32>
    %165 = vector.shape_cast %162 : vector<8x128xf32> to vector<1x8x128xf32>
    tpu.vector_store %arg10[%c1_103, %c0_104, %c0_105], %165 {strides = array<i32>} : memref<2x8x128xf32, #tpu.memory_space<vmem>>, vector<1x8x128xf32>,
    %c1_106 = arith.constant 1 : index
    %c0_107 = arith.constant 0 : index
    %c0_108 = arith.constant 0 : index
    %166 = vector.load %arg11[%c1_106, %c0_107, %c0_108] : memref<2x8x128xf32, #tpu.memory_space<vmem>>, vector<1x8x128xf32>
    %167 = vector.shape_cast %166 : vector<1x8x128xf32> to vector<8x128xf32>
    %168 = vector.shape_cast %160 : vector<8x128xf32> to vector<1x8x128xf32>
    tpu.vector_store %arg11[%c1_106, %c0_107, %c0_108], %168 {strides = array<i32>} : memref<2x8x128xf32, #tpu.memory_space<vmem>>, vector<1x8x128xf32>,
    %169 = arith.truncf %162 : vector<8x128xf32> to vector<8x128xbf16>
    %c0_109 = arith.constant 0 : index
    %c0_110 = arith.constant 0 : index
    %170 = vector.load %arg5[%c0_109, %c0_110] : memref<128x128xbf16, #tpu.memory_space<vmem>>, vector<128x128xbf16>
    %cst_111 = arith.constant dense<0.000000e+00> : vector<8x128xf32>
    %171 = tpu.matmul %169, %170, %cst_111 {dimension_numbers = #tpu.dot_dimension_numbers<[1], [0], [0], [1], [0, 0, 1, 1], [], []>} : vector<8x128xbf16>, vector<128x128xbf16>, vector<8x128xf32> -> vector<8x128xf32>
    %c0_112 = arith.constant 0 : index
    %c0_113 = arith.constant 0 : index
    %172 = vector.load %arg6[%c0_112, %c0_113] : memref<1x128xf32, #tpu.memory_space<vmem>>, vector<1x128xf32>
    %173 = vector.broadcast %172 : vector<1x128xf32> to vector<8x128xf32>
    %174 = arith.addf %171, %173 : vector<8x128xf32>
    %c0_114 = arith.constant 0 : index
    %c0_115 = arith.constant 0 : index
    %175 = vector.load %arg9[%c0_114, %c0_115] : memref<8x128xf32, #tpu.memory_space<vmem>>, vector<8x128xf32>
    tpu.vector_store %arg9[%c0_114, %c0_115], %174 {strides = array<i32>} : memref<8x128xf32, #tpu.memory_space<vmem>>, vector<8x128xf32>,
    return
  }
}

</mosaic_0001>

<llo_original>
// kernel: decoder_forward.1
$region0: #{decoder_forward.1}
  #allocation0 [shape = 'u32[]', space=smem, size = 0x4, offset = 0x4, fixed_abs, tag = 'smem constant byte address 0x4 - core index']
  #allocation1 [shape = 'u32[144,128]{1,0:T(1,128)}', space=vmem, size = 0x12000, scoped, tag = 'internal scratch']
  #allocation2 [shape = 'f32[8,128]{1,0:T(8,128)}', space=vmem, size = 0x1000, scoped, tag = 'scratch operand']
  #allocation3 [shape = 's32[8]{0}', space=sflag, size = 0x20, scoped, tag = 'scratch operand']
  #allocation15 [shape = 's32[]', space=sflag, size = 0x4, offset = 0, fixed_abs, tag = 'sflag constant byte address 0x0 - dummy sync flag']
  #allocation16 [shape = 's32[]', space=sflag, size = 0x4, offset = 0, fixed_abs, tag = 'sflag constant byte address 0x0 - dummy sync flag']
  #allocation17 [shape = 'u32[]', space=smem, size = 0x4, offset = 0x44, fixed_abs, tag = 'smem constant byte address 0x44 - assertion arg 0']
  #allocation18 [shape = 'u32[]', space=smem, size = 0x4, offset = 0x48, fixed_abs, tag = 'smem constant byte address 0x48 - assertion arg 1']
  #allocation19 [shape = 's32[]', space=sflag, size = 0x4, offset = 0, fixed_abs, tag = 'sflag constant byte address 0x0 - dummy sync flag']
  #allocation20 [shape = 's32[]', space=sflag, size = 0x4, offset = 0, fixed_abs, tag = 'sflag constant byte address 0x0 - dummy sync flag']
  #allocation21 [shape = 's32[]', space=sflag, size = 0x4, offset = 0, fixed_abs, tag = 'sflag constant byte address 0x0 - dummy sync flag']
  #allocation22 [shape = 's32[]', space=sflag, size = 0x4, offset = 0, fixed_abs, tag = 'sflag constant byte address 0x0 - dummy sync flag']
  #allocation23 [shape = 's32[]', space=sflag, size = 0x4, offset = 0, fixed_abs, tag = 'sflag constant byte address 0x0 - dummy sync flag']
  #allocation24 [shape = 's32[]', space=sflag, size = 0x4, offset = 0, fixed_abs, tag = 'sflag constant byte address 0x0 - dummy sync flag']
  #allocation25 [shape = 's32[]', space=sflag, size = 0x4, offset = 0, fixed_abs, tag = 'sflag constant byte address 0x0 - dummy sync flag']
  #allocation26 [shape = 's32[]', space=sflag, size = 0x4, offset = 0, fixed_abs, tag = 'sflag constant byte address 0x0 - dummy sync flag']
  #allocation27 [shape = 's32[]', space=sflag, size = 0x4, offset = 0, fixed_abs, tag = 'sflag constant byte address 0x0 - dummy sync flag']
  #allocation28 [shape = 's32[]', space=sflag, size = 0x4, offset = 0, fixed_abs, tag = 'sflag constant byte address 0x0 - dummy sync flag']
  #allocation29 [shape = 's32[]', space=sflag, size = 0x4, offset = 0, fixed_abs, tag = 'sflag constant byte address 0x0 - dummy sync flag']
  #allocation30 [shape = 's32[]', space=sflag, size = 0x4, offset = 0, fixed_abs, tag = 'sflag constant byte address 0x0 - dummy sync flag']
  #allocation31 [shape = 's32[]', space=sflag, size = 0x4, offset = 0, fixed_abs, tag = 'sflag constant byte address 0x0 - dummy sync flag']
  #allocation32 [shape = 's32[]', space=sflag, size = 0x4, offset = 0, fixed_abs, tag = 'sflag constant byte address 0x0 - dummy sync flag']
  %s0 = inlined_call_operand.vmem [shape: s32[8], index: 0, kind: input, shape index: {}]
  %s1 = inlined_call_operand.hbm [shape: f32[32,128], index: 1, kind: input, shape index: {}]
  %s2 = inlined_call_operand.hbm [shape: bf16[2,128,512], index: 2, kind: input, shape index: {}]
  %s3 = inlined_call_operand.hbm [shape: bf16[2,128,512], index: 3, kind: input, shape index: {}]
  %s4 = inlined_call_operand.hbm [shape: f32[2,1,512], index: 4, kind: input, shape index: {}]
  %s5 = inlined_call_operand.vmem [shape: bf16[128,128], index: 5, kind: input, shape index: {}]
  %s6 = inlined_call_operand.hbm [shape: f32[1,128], index: 6, kind: input, shape index: {}]
  %s7 = inlined_call_operand.vmem [shape: f32[2,8,128], index: 7, kind: input, shape index: {}, may-alias: {7,10}]
  %s8 = inlined_call_operand.vmem [shape: f32[2,8,128], index: 8, kind: input, shape index: {}, may-alias: {8,11}]
  %s9 = inlined_call_operand.hbm [shape: f32[8,128], index: 9, kind: output, shape index: {0}]
  %s10 = inlined_call_operand.vmem [shape: f32[2,8,128], index: 10, kind: output, shape index: {1}, may-alias: {7,10}]
  %s11 = inlined_call_operand.vmem [shape: f32[2,8,128], index: 11, kind: output, shape index: {2}, may-alias: {8,11}]
  %12 = xla_tuple %s9, %s10, %s11
  %s13 = sld [smem:[#allocation0]]
  $region110: #{decoder_forward.1} parent=0
    _
  %s15 = ssub.s32 1, %s13
  %s16 = scalar_select 0, %s15, %s13
  $region1: #{decoder_forward.1} parent=0
    #allocation4 [shape = 'u8[512]{0}', space=smem, size = 0x200, scoped, tag = 'input window, operand 0, single buffered']
    #allocation5 [shape = 's32[1]{0}', space=sflag, size = 0x4, scoped, tag = 'scoped memory for decoder_forward.1']
    #allocation6 [shape = 's32[1]{0}', space=sflag, size = 0x4, scoped, tag = 'scoped memory for decoder_forward.1']
    #allocation7 [shape = 's32[1]{0}', space=sflag, size = 0x4, scoped, tag = 'scoped memory for decoder_forward.1']
    #allocation8 [shape = 'u8[262144]{0}', space=vmem, size = 0x40000, scoped, tag = 'input window, operand 2, single buffered']
    #allocation9 [shape = 'u8[262144]{0}', space=vmem, size = 0x40000, scoped, tag = 'input window, operand 3, single buffered']
    #allocation10 [shape = 's32[1]{0}', space=sflag, size = 0x4, scoped, tag = 'scoped memory for decoder_forward.1']
    #allocation11 [shape = 'u8[4096]{0}', space=vmem, size = 0x1000, scoped, tag = 'input window, operand 4, single buffered']
    #allocation12 [shape = 'u8[512]{0}', space=vmem, size = 0x400, scoped, tag = 'input window, operand 6, single buffered']
    #allocation13 [shape = 's32[1]{0}', space=sflag, size = 0x4, scoped, tag = 'scoped memory for decoder_forward.1']
    #allocation14 [shape = 'u8[4096]{0}', space=vmem, size = 0x1000, scoped, tag = 'output window, operand 0, single buffered']
    %17 = vsyncpa [#allocation7], 0
    %18 = vsyncpa [#allocation5], 0
    %19 = vsyncpa [#allocation10], 0
    %20 = vsyncpa [#allocation13], 0
    %21 = vsyncpa [#allocation6], 0
    // Predicated region
    $region2: #{decoder_forward.1} parent=1 // pred_check
      _
    $region3: #{decoder_forward.1} parent=1 // pred_check_branch
      %23 = sbr.rel (0) target = $region5
    $region4: #{decoder_forward.1} parent=1 // pred_region
      %s25 = ssub.s32 16, 16
      %26 = vsyncadd [#allocation7], %s25
      %s28 = sshll.u32 %s0, 4
      %s29 = int_to_ptr.vmem [resolvable:$true] %s28
      %31 = dma.vmem_to_smem %s29, 16, [#allocation4], [#allocation7]
    $region5: #{decoder_forward.1} parent=1 // pred_fallthru
      _
    // Predicated region
    $region6: #{decoder_forward.1} parent=1 // pred_check
      _
    $region7: #{decoder_forward.1} parent=1 // pred_check_branch
      %33 = sbr.rel (0) target = $region9
    $region8: #{decoder_forward.1} parent=1 // pred_region
      %s35 = ssub.s32 8192, 8192
      %36 = vsyncadd [#allocation5], %s35
      %s37 = sshll.u32 [#allocation8], 4
      %s38 = int_to_ptr.vmem [resolvable:$true] %s37
      %43 = dma.hbm_to_vmem [thread:$0]  %s2, 8192, %s38, [#allocation5], 256, 256, 16
    $region9: #{decoder_forward.1} parent=1 // pred_fallthru
      _
    // Predicated region
    $region10: #{decoder_forward.1} parent=1 // pred_check
      _
    $region11: #{decoder_forward.1} parent=1 // pred_check_branch
      %45 = sbr.rel (0) target = $region13
    $region12: #{decoder_forward.1} parent=1 // pred_region
      %s47 = ssub.s32 8192, 8192
      %48 = vsyncadd [#allocation10], %s47
      %s49 = sshll.u32 [#allocation9], 4
      %s50 = int_to_ptr.vmem [resolvable:$true] %s49
      %55 = dma.hbm_to_vmem [thread:$0]  %s3, 8192, %s50, [#allocation10], 256, 256, 16
    $region13: #{decoder_forward.1} parent=1 // pred_fallthru
      _
    // Predicated region
    $region14: #{decoder_forward.1} parent=1 // pred_check
      _
    $region15: #{decoder_forward.1} parent=1 // pred_check_branch
      %57 = sbr.rel (0) target = $region17
    $region16: #{decoder_forward.1} parent=1 // pred_region
      %s59 = ssub.s32 128, 128
      %60 = vsyncadd [#allocation10], %s59
      %s61 = sshll.u32 [#allocation11], 4
      %s62 = int_to_ptr.vmem [resolvable:$true] %s61
      %67 = dma.hbm_to_vmem [thread:$0]  %s4, 128, %s62, [#allocation10], 64, 64, 4
    $region17: #{decoder_forward.1} parent=1 // pred_fallthru
      _
    // Predicated region
    $region18: #{decoder_forward.1} parent=1 // pred_check
      _
    $region19: #{decoder_forward.1} parent=1 // pred_check_branch
      %69 = sbr.rel (0) target = $region21
    $region20: #{decoder_forward.1} parent=1 // pred_region
      _
    $region21: #{decoder_forward.1} parent=1 // pred_fallthru
      _
    // Predicated region
    $region22: #{decoder_forward.1} parent=1 // pred_check
      _
    $region23: #{decoder_forward.1} parent=1 // pred_check_branch
      %71 = sbr.rel (0) target = $region25
    $region24: #{decoder_forward.1} parent=1 // pred_region
      %s73 = ssub.s32 16, 16
      %74 = vsyncadd [#allocation13], %s73
      %s76 = sshll.u32 [#allocation12], 4
      %s77 = int_to_ptr.vmem [resolvable:$true] %s76
      %79 = dma.hbm_to_vmem [thread:$0]  %s6, 16, %s77, [#allocation13]
    $region25: #{decoder_forward.1} parent=1 // pred_fallthru
      _
    // Predicated region
    $region26: #{decoder_forward.1} parent=1 // pred_check
      _
    $region27: #{decoder_forward.1} parent=1 // pred_check_branch
      %81 = sbr.rel (0) target = $region29
    $region28: #{decoder_forward.1} parent=1 // pred_region
      _
    $region29: #{decoder_forward.1} parent=1 // pred_fallthru
      _
    // Predicated region
    $region30: #{decoder_forward.1} parent=1 // pred_check
      _
    $region31: #{decoder_forward.1} parent=1 // pred_check_branch
      %83 = sbr.rel (0) target = $region33
    $region32: #{decoder_forward.1} parent=1 // pred_region
      _
    $region33: #{decoder_forward.1} parent=1 // pred_fallthru
      _
    // Predicated region
    $region34: #{decoder_forward.1} parent=1 // pred_check
      _
    $region35: #{decoder_forward.1} parent=1 // pred_check_branch
      %85 = sbr.rel (0) target = $region37
    $region36: #{decoder_forward.1} parent=1 // pred_region
      %86 = dma.done [#allocation7], 16
    $region37: #{decoder_forward.1} parent=1 // pred_fallthru
      _
    // Predicated region
    $region38: #{decoder_forward.1} parent=1 // pred_check
      _
    $region39: #{decoder_forward.1} parent=1 // pred_check_branch
      %88 = sbr.rel (0) target = $region41
    $region40: #{decoder_forward.1} parent=1 // pred_region
      %89 = dma.done [#allocation5], 8192
    $region41: #{decoder_forward.1} parent=1 // pred_fallthru
      _
    // Predicated region
    $region42: #{decoder_forward.1} parent=1 // pred_check
      _
    $region43: #{decoder_forward.1} parent=1 // pred_check_branch
      %91 = sbr.rel (0) target = $region45
    $region44: #{decoder_forward.1} parent=1 // pred_region
      %92 = dma.done [#allocation10], 8192
    $region45: #{decoder_forward.1} parent=1 // pred_fallthru
      _
    // Predicated region
    $region46: #{decoder_forward.1} parent=1 // pred_check
      _
    $region47: #{decoder_forward.1} parent=1 // pred_check_branch
      %94 = sbr.rel (0) target = $region49
    $region48: #{decoder_forward.1} parent=1 // pred_region
      %95 = dma.done [#allocation10], 128
    $region49: #{decoder_forward.1} parent=1 // pred_fallthru
      _
    // Predicated region
    $region50: #{decoder_forward.1} parent=1 // pred_check
      _
    $region51: #{decoder_forward.1} parent=1 // pred_check_branch
      %97 = sbr.rel (0) target = $region53
    $region52: #{decoder_forward.1} parent=1 // pred_region
      %98 = dma.done [#allocation13], 16
    $region53: #{decoder_forward.1} parent=1 // pred_fallthru
      _
    %99 = sfence
    %s101 = sld [smem:[#allocation4]]
    %s102 = smul.addr %s101, 16
    %s103 = scalar_lea.hbm %s1, %s102
    // Predicated region
    $region54: #{decoder_forward.1} parent=1 // pred_check
      _
    $region55: #{decoder_forward.1} parent=1 // pred_check_branch
      %105 = sbr.rel target = $region57
    $region56: #{decoder_forward.1} parent=1 // pred_region
      %106 = sst [smem:[#allocation17]] [#allocation16]
      %107 = sst [smem:[#allocation18]] [#allocation15]
    $region57: #{decoder_forward.1} parent=1 // pred_fallthru
      _
    %109 = shalt.err (0)
    %s111 = sshll.u32 [#allocation2], 4
    %s112 = int_to_ptr.vmem [resolvable:$true] %s111
    %114 = dma.hbm_to_vmem [thread:$0]  %s103, 16, %s112, [#allocation3]
    %s115 = sld [smem:[#allocation4 + $0x1]]
    %s116 = smul.addr %s115, 16
    %s117 = scalar_lea.hbm %s1, %s116
    %s118 = scalar_lea.vmem [#allocation2], 1
    %s119 = scalar_lea.sflag [#allocation3], 1
    // Predicated region
    $region58: #{decoder_forward.1} parent=1 // pred_check
      _
    $region59: #{decoder_forward.1} parent=1 // pred_check_branch
      %121 = sbr.rel target = $region61
    $region60: #{decoder_forward.1} parent=1 // pred_region
      %122 = sst [smem:[#allocation17]] [#allocation20]
      %123 = sst [smem:[#allocation18]] [#allocation19]
    $region61: #{decoder_forward.1} parent=1 // pred_fallthru
      _
    %125 = shalt.err (0)
    %s127 = sshll.u32 %s118, 4
    %s128 = int_to_ptr.vmem [resolvable:$true] %s127
    %130 = dma.hbm_to_vmem [thread:$0]  %s117, 16, %s128, %s119
    %s131 = sld [smem:[#allocation4 + $0x2]]
    %s132 = smul.addr %s131, 16
    %s133 = scalar_lea.hbm %s1, %s132
    %s134 = scalar_lea.vmem [#allocation2], 2
    %s135 = scalar_lea.sflag [#allocation3], 2
    // Predicated region
    $region62: #{decoder_forward.1} parent=1 // pred_check
      _
    $region63: #{decoder_forward.1} parent=1 // pred_check_branch
      %137 = sbr.rel target = $region65
    $region64: #{decoder_forward.1} parent=1 // pred_region
      %138 = sst [smem:[#allocation17]] [#allocation22]
      %139 = sst [smem:[#allocation18]] [#allocation21]
    $region65: #{decoder_forward.1} parent=1 // pred_fallthru
      _
    %141 = shalt.err (0)
    %s143 = sshll.u32 %s134, 4
    %s144 = int_to_ptr.vmem [resolvable:$true] %s143
    %146 = dma.hbm_to_vmem [thread:$0]  %s133, 16, %s144, %s135
    %s147 = sld [smem:[#allocation4 + $0x3]]
    %s148 = smul.addr %s147, 16
    %s149 = scalar_lea.hbm %s1, %s148
    %s150 = scalar_lea.vmem [#allocation2], 3
    %s151 = scalar_lea.sflag [#allocation3], 3
    // Predicated region
    $region66: #{decoder_forward.1} parent=1 // pred_check
      _
    $region67: #{decoder_forward.1} parent=1 // pred_check_branch
      %153 = sbr.rel target = $region69
    $region68: #{decoder_forward.1} parent=1 // pred_region
      %154 = sst [smem:[#allocation17]] [#allocation24]
      %155 = sst [smem:[#allocation18]] [#allocation23]
    $region69: #{decoder_forward.1} parent=1 // pred_fallthru
      _
    %157 = shalt.err (0)
    %s159 = sshll.u32 %s150, 4
    %s160 = int_to_ptr.vmem [resolvable:$true] %s159
    %162 = dma.hbm_to_vmem [thread:$0]  %s149, 16, %s160, %s151
    %s163 = sld [smem:[#allocation4 + $0x4]]
    %s164 = smul.addr %s163, 16
    %s165 = scalar_lea.hbm %s1, %s164
    %s166 = scalar_lea.vmem [#allocation2], 4
    %s167 = scalar_lea.sflag [#allocation3], 4
    // Predicated region
    $region70: #{decoder_forward.1} parent=1 // pred_check
      _
    $region71: #{decoder_forward.1} parent=1 // pred_check_branch
      %169 = sbr.rel target = $region73
    $region72: #{decoder_forward.1} parent=1 // pred_region
      %170 = sst [smem:[#allocation17]] [#allocation26]
      %171 = sst [smem:[#allocation18]] [#allocation25]
    $region73: #{decoder_forward.1} parent=1 // pred_fallthru
      _
    %173 = shalt.err (0)
    %s175 = sshll.u32 %s166, 4
    %s176 = int_to_ptr.vmem [resolvable:$true] %s175
    %178 = dma.hbm_to_vmem [thread:$0]  %s165, 16, %s176, %s167
    %s179 = sld [smem:[#allocation4 + $0x5]]
    %s180 = smul.addr %s179, 16
    %s181 = scalar_lea.hbm %s1, %s180
    %s182 = scalar_lea.vmem [#allocation2], 5
    %s183 = scalar_lea.sflag [#allocation3], 5
    // Predicated region
    $region74: #{decoder_forward.1} parent=1 // pred_check
      _
    $region75: #{decoder_forward.1} parent=1 // pred_check_branch
      %185 = sbr.rel target = $region77
    $region76: #{decoder_forward.1} parent=1 // pred_region
      %186 = sst [smem:[#allocation17]] [#allocation28]
      %187 = sst [smem:[#allocation18]] [#allocation27]
    $region77: #{decoder_forward.1} parent=1 // pred_fallthru
      _
    %189 = shalt.err (0)
    %s191 = sshll.u32 %s182, 4
    %s192 = int_to_ptr.vmem [resolvable:$true] %s191
    %194 = dma.hbm_to_vmem [thread:$0]  %s181, 16, %s192, %s183
    %s195 = sld [smem:[#allocation4 + $0x6]]
    %s196 = smul.addr %s195, 16
    %s197 = scalar_lea.hbm %s1, %s196
    %s198 = scalar_lea.vmem [#allocation2], 6
    %s199 = scalar_lea.sflag [#allocation3], 6
    // Predicated region
    $region78: #{decoder_forward.1} parent=1 // pred_check
      _
    $region79: #{decoder_forward.1} parent=1 // pred_check_branch
      %201 = sbr.rel target = $region81
    $region80: #{decoder_forward.1} parent=1 // pred_region
      %202 = sst [smem:[#allocation17]] [#allocation30]
      %203 = sst [smem:[#allocation18]] [#allocation29]
    $region81: #{decoder_forward.1} parent=1 // pred_fallthru
      _
    %205 = shalt.err (0)
    %s207 = sshll.u32 %s198, 4
    %s208 = int_to_ptr.vmem [resolvable:$true] %s207
    %210 = dma.hbm_to_vmem [thread:$0]  %s197, 16, %s208, %s199
    %s211 = sld [smem:[#allocation4 + $0x7]]
    %s212 = smul.addr %s211, 16
    %s213 = scalar_lea.hbm %s1, %s212
    %s214 = scalar_lea.vmem [#allocation2], 7
    %s215 = scalar_lea.sflag [#allocation3], 7
    // Predicated region
    $region82: #{decoder_forward.1} parent=1 // pred_check
      _
    $region83: #{decoder_forward.1} parent=1 // pred_check_branch
      %217 = sbr.rel target = $region85
    $region84: #{decoder_forward.1} parent=1 // pred_region
      %218 = sst [smem:[#allocation17]] [#allocation32]
      %219 = sst [smem:[#allocation18]] [#allocation31]
    $region85: #{decoder_forward.1} parent=1 // pred_fallthru
      _
    %221 = shalt.err (0)
    %s223 = sshll.u32 %s214, 4
    %s224 = int_to_ptr.vmem [resolvable:$true] %s223
    %226 = dma.hbm_to_vmem [thread:$0]  %s213, 16, %s224, %s215
    %s227 = smul.u32 1, 1
    %s228 = sshll.u32 %s227, 4
    %229 = dma.done [#allocation3], %s228
    %s230 = sshll.u32 %s227, 4
    %231 = dma.done %s119, %s230
    %s232 = sshll.u32 %s227, 4
    %233 = dma.done %s135, %s232
    %s234 = sshll.u32 %s227, 4
    %235 = dma.done %s151, %s234
    %s236 = sshll.u32 %s227, 4
    %237 = dma.done %s167, %s236
    %s238 = sshll.u32 %s227, 4
    %239 = dma.done %s183, %s238
    %s240 = sshll.u32 %s227, 4
    %241 = dma.done %s199, %s240
    %s242 = sshll.u32 %s227, 4
    %243 = dma.done %s215, %s242
    %v244 = vld [vmem:[#allocation2] sm:$0xff]
    %v245 = vpack.c.bf16 %v244, %v244
    %v246 = vld [vmem:[%s7] sm:$0xff]
    %v247 = vld [vmem:[%s8] sm:$0xff]
    %v248 = vld [vmem:[#allocation8] sm:$0xff]
    %v249 = vld [vmem:[#allocation8 + $0x8] sm:$0xff]
    %v250 = vld [vmem:[#allocation8 + $0x10] sm:$0xff]
    %v251 = vld [vmem:[#allocation8 + $0x18] sm:$0xff]
    %v252 = vld [vmem:[#allocation8 + $0x20] sm:$0xff]
    %v253 = vld [vmem:[#allocation8 + $0x28] sm:$0xff]
    %v254 = vld [vmem:[#allocation8 + $0x30] sm:$0xff]
    %v255 = vld [vmem:[#allocation8 + $0x38] sm:$0xff]
    %v256 = vld [vmem:[#allocation8 + $0x40] sm:$0xff]
    %v257 = vld [vmem:[#allocation8 + $0x48] sm:$0xff]
    %v258 = vld [vmem:[#allocation8 + $0x50] sm:$0xff]
    %v259 = vld [vmem:[#allocation8 + $0x58] sm:$0xff]
    %v260 = vld [vmem:[#allocation8 + $0x60] sm:$0xff]
    %v261 = vld [vmem:[#allocation8 + $0x68] sm:$0xff]
    %v262 = vld [vmem:[#allocation8 + $0x70] sm:$0xff]
    %v263 = vld [vmem:[#allocation8 + $0x78] sm:$0xff]
    %v264 = vld [vmem:[#allocation8 + $0x80] sm:$0xff]
    %v265 = vld [vmem:[#allocation8 + $0x88] sm:$0xff]
    %v266 = vld [vmem:[#allocation8 + $0x90] sm:$0xff]
    %v267 = vld [vmem:[#allocation8 + $0x98] sm:$0xff]
    %v268 = vld [vmem:[#allocation8 + $0xa0] sm:$0xff]
    %v269 = vld [vmem:[#allocation8 + $0xa8] sm:$0xff]
    %v270 = vld [vmem:[#allocation8 + $0xb0] sm:$0xff]
    %v271 = vld [vmem:[#allocation8 + $0xb8] sm:$0xff]
    %v272 = vld [vmem:[#allocation8 + $0xc0] sm:$0xff]
    %v273 = vld [vmem:[#allocation8 + $0xc8] sm:$0xff]
    %v274 = vld [vmem:[#allocation8 + $0xd0] sm:$0xff]
    %v275 = vld [vmem:[#allocation8 + $0xd8] sm:$0xff]
    %v276 = vld [vmem:[#allocation8 + $0xe0] sm:$0xff]
    %v277 = vld [vmem:[#allocation8 + $0xe8] sm:$0xff]
    %v278 = vld [vmem:[#allocation8 + $0xf0] sm:$0xff]
    %v279 = vld [vmem:[#allocation8 + $0xf8] sm:$0xff]
    %v280 = vpack.c.bf16 %v246, %v246
    %v281 = vld [vmem:[#allocation9] sm:$0xff]
    %v282 = vld [vmem:[#allocation9 + $0x8] sm:$0xff]
    %v283 = vld [vmem:[#allocation9 + $0x10] sm:$0xff]
    %v284 = vld [vmem:[#allocation9 + $0x18] sm:$0xff]
    %v285 = vld [vmem:[#allocation9 + $0x20] sm:$0xff]
    %v286 = vld [vmem:[#allocation9 + $0x28] sm:$0xff]
    %v287 = vld [vmem:[#allocation9 + $0x30] sm:$0xff]
    %v288 = vld [vmem:[#allocation9 + $0x38] sm:$0xff]
    %v289 = vld [vmem:[#allocation9 + $0x40] sm:$0xff]
    %v290 = vld [vmem:[#allocation9 + $0x48] sm:$0xff]
    %v291 = vld [vmem:[#allocation9 + $0x50] sm:$0xff]
    %v292 = vld [vmem:[#allocation9 + $0x58] sm:$0xff]
    %v293 = vld [vmem:[#allocation9 + $0x60] sm:$0xff]
    %v294 = vld [vmem:[#allocation9 + $0x68] sm:$0xff]
    %v295 = vld [vmem:[#allocation9 + $0x70] sm:$0xff]
    %v296 = vld [vmem:[#allocation9 + $0x78] sm:$0xff]
    %v297 = vld [vmem:[#allocation9 + $0x80] sm:$0xff]
    %v298 = vld [vmem:[#allocation9 + $0x88] sm:$0xff]
    %v299 = vld [vmem:[#allocation9 + $0x90] sm:$0xff]
    %v300 = vld [vmem:[#allocation9 + $0x98] sm:$0xff]
    %v301 = vld [vmem:[#allocation9 + $0xa0] sm:$0xff]
    %v302 = vld [vmem:[#allocation9 + $0xa8] sm:$0xff]
    %v303 = vld [vmem:[#allocation9 + $0xb0] sm:$0xff]
    %v304 = vld [vmem:[#allocation9 + $0xb8] sm:$0xff]
    %v305 = vld [vmem:[#allocation9 + $0xc0] sm:$0xff]
    %v306 = vld [vmem:[#allocation9 + $0xc8] sm:$0xff]
    %v307 = vld [vmem:[#allocation9 + $0xd0] sm:$0xff]
    %v308 = vld [vmem:[#allocation9 + $0xd8] sm:$0xff]
    %v309 = vld [vmem:[#allocation9 + $0xe0] sm:$0xff]
    %v310 = vld [vmem:[#allocation9 + $0xe8] sm:$0xff]
    %v311 = vld [vmem:[#allocation9 + $0xf0] sm:$0xff]
    %v312 = vld [vmem:[#allocation9 + $0xf8] sm:$0xff]
    %v345 = vunpack.c.l.b16 %v281
    %v346 = vunpack.c.h.b16 %v281
    %v347 = vunpack.c.l.b16 %v282
    %v348 = vunpack.c.h.b16 %v282
    %v349 = vunpack.c.l.b16 %v283
    %v350 = vunpack.c.h.b16 %v283
    %v351 = vunpack.c.l.b16 %v284
    %v352 = vunpack.c.h.b16 %v284
    %v353 = vunpack.c.l.b16 %v285
    %v354 = vunpack.c.h.b16 %v285
    %v355 = vunpack.c.l.b16 %v286
    %v356 = vunpack.c.h.b16 %v286
    %v357 = vunpack.c.l.b16 %v287
    %v358 = vunpack.c.h.b16 %v287
    %v359 = vunpack.c.l.b16 %v288
    %v360 = vunpack.c.h.b16 %v288
    %v361 = vunpack.c.l.b16 %v289
    %v362 = vunpack.c.h.b16 %v289
    %v363 = vunpack.c.l.b16 %v290
    %v364 = vunpack.c.h.b16 %v290
    %v365 = vunpack.c.l.b16 %v291
    %v366 = vunpack.c.h.b16 %v291
    %v367 = vunpack.c.l.b16 %v292
    %v368 = vunpack.c.h.b16 %v292
    %v369 = vunpack.c.l.b16 %v293
    %v370 = vunpack.c.h.b16 %v293
    %v371 = vunpack.c.l.b16 %v294
    %v372 = vunpack.c.h.b16 %v294
    %v373 = vunpack.c.l.b16 %v295
    %v374 = vunpack.c.h.b16 %v295
    %v375 = vunpack.c.l.b16 %v296
    %v376 = vunpack.c.h.b16 %v296
    %v377 = vunpack.c.l.b16 %v297
    %v378 = vunpack.c.h.b16 %v297
    %v379 = vunpack.c.l.b16 %v298
    %v380 = vunpack.c.h.b16 %v298
    %v381 = vunpack.c.l.b16 %v299
    %v382 = vunpack.c.h.b16 %v299
    %v383 = vunpack.c.l.b16 %v300
    %v384 = vunpack.c.h.b16 %v300
    %v385 = vunpack.c.l.b16 %v301
    %v386 = vunpack.c.h.b16 %v301
    %v387 = vunpack.c.l.b16 %v302
    %v388 = vunpack.c.h.b16 %v302
    %v389 = vunpack.c.l.b16 %v303
    %v390 = vunpack.c.h.b16 %v303
    %v391 = vunpack.c.l.b16 %v304
    %v392 = vunpack.c.h.b16 %v304
    %v393 = vunpack.c.l.b16 %v305
    %v394 = vunpack.c.h.b16 %v305
    %v395 = vunpack.c.l.b16 %v306
    %v396 = vunpack.c.h.b16 %v306
    %v397 = vunpack.c.l.b16 %v307
    %v398 = vunpack.c.h.b16 %v307
    %v399 = vunpack.c.l.b16 %v308
    %v400 = vunpack.c.h.b16 %v308
    %v401 = vunpack.c.l.b16 %v309
    %v402 = vunpack.c.h.b16 %v309
    %v403 = vunpack.c.l.b16 %v310
    %v404 = vunpack.c.h.b16 %v310
    %v405 = vunpack.c.l.b16 %v311
    %v406 = vunpack.c.h.b16 %v311
    %v407 = vunpack.c.l.b16 %v312
    %v408 = vunpack.c.h.b16 %v312
    %v409 = vpack.c.b16 %v349, %v345
    %v410 = vpack.c.b16 %v350, %v346
    %v411 = vpack.c.b16 %v351, %v347
    %v412 = vpack.c.b16 %v352, %v348
    %v413 = vpack.c.b16 %v357, %v353
    %v414 = vpack.c.b16 %v358, %v354
    %v415 = vpack.c.b16 %v359, %v355
    %v416 = vpack.c.b16 %v360, %v356
    %v417 = vpack.c.b16 %v365, %v361
    %v418 = vpack.c.b16 %v366, %v362
    %v419 = vpack.c.b16 %v367, %v363
    %v420 = vpack.c.b16 %v368, %v364
    %v421 = vpack.c.b16 %v373, %v369
    %v422 = vpack.c.b16 %v374, %v370
    %v423 = vpack.c.b16 %v375, %v371
    %v424 = vpack.c.b16 %v376, %v372
    %v425 = vpack.c.b16 %v381, %v377
    %v426 = vpack.c.b16 %v382, %v378
    %v427 = vpack.c.b16 %v383, %v379
    %v428 = vpack.c.b16 %v384, %v380
    %v429 = vpack.c.b16 %v389, %v385
    %v430 = vpack.c.b16 %v390, %v386
    %v431 = vpack.c.b16 %v391, %v387
    %v432 = vpack.c.b16 %v392, %v388
    %v433 = vpack.c.b16 %v397, %v393
    %v434 = vpack.c.b16 %v398, %v394
    %v435 = vpack.c.b16 %v399, %v395
    %v436 = vpack.c.b16 %v400, %v396
    %v437 = vpack.c.b16 %v405, %v401
    %v438 = vpack.c.b16 %v406, %v402
    %v439 = vpack.c.b16 %v407, %v403
    %v440 = vpack.c.b16 %v408, %v404
    %473 = vmatprep.subr.bf16.mxu0 %v410
    %474 = vmatpush1.bf16.msra.mxu0 %v409
    %475 = vmatprep.subr.bf16.mxu0 %v414
    %476 = vmatpush1.bf16.msra.mxu0 %v413
    %477 = vmatprep.subr.bf16.mxu0 %v418
    %478 = vmatpush1.bf16.msra.mxu0 %v417
    %479 = vmatprep.subr.bf16.mxu0 %v422
    %480 = vmatpush1.bf16.msra.mxu0 %v421
    %481 = vmatprep.subr.bf16.mxu0 %v426
    %482 = vmatpush1.bf16.msra.mxu0 %v425
    %483 = vmatprep.subr.bf16.mxu0 %v430
    %484 = vmatpush1.bf16.msra.mxu0 %v429
    %485 = vmatprep.subr.bf16.mxu0 %v434
    %486 = vmatpush1.bf16.msra.mxu0 %v433
    %487 = vmatprep.subr.bf16.mxu0 %v438
    %488 = vmatpush1.bf16.msra.mxu0 %v437
    %489 = vmatprep.subr.bf16.mxu0 0
    %490 = vmatpush1.bf16.msra.mxu0 0
    %491 = vmatprep.subr.bf16.mxu0 0
    %492 = vmatpush1.bf16.msra.mxu0 0
    %493 = vmatprep.subr.bf16.mxu0 0
    %494 = vmatpush1.bf16.msra.mxu0 0
    %495 = vmatprep.subr.bf16.mxu0 0
    %496 = vmatpush1.bf16.msra.mxu0 0
    %497 = vmatprep.subr.bf16.mxu0 0
    %498 = vmatpush1.bf16.msra.mxu0 0
    %499 = vmatprep.subr.bf16.mxu0 0
    %500 = vmatpush1.bf16.msra.mxu0 0
    %501 = vmatprep.subr.bf16.mxu0 0
    %502 = vmatpush1.bf16.msra.mxu0 0
    %503 = vmatprep.subr.bf16.mxu0 0
    %504 = vmatpush1.bf16.msra.mxu0 0
    %505 = vmatprep.mubr.bf16.mxu0 0
    %506 = vmatmul.mubr.bf16.gmra.mrb[0].mxu0 %v280
    %v507 = vpop.f32.mrb[0].mxu0
    %v508 = vadd.f32 0.0, %v507
    %v509 = vpop.f32.mrb[0].mxu0
    %v510 = vadd.f32 0.0, %v509
    %v511 = vpop.f32.mrb[0].mxu0
    %v512 = vpop.f32.mrb[0].mxu0
    %513 = vdwg.mxu0
    %514 = vmatprep.subr.bf16.mxu0 %v412
    %515 = vmatpush1.bf16.msra.mxu0 %v411
    %516 = vmatprep.subr.bf16.mxu0 %v416
    %517 = vmatpush1.bf16.msra.mxu0 %v415
    %518 = vmatprep.subr.bf16.mxu0 %v420
    %519 = vmatpush1.bf16.msra.mxu0 %v419
    %520 = vmatprep.subr.bf16.mxu0 %v424
    %521 = vmatpush1.bf16.msra.mxu0 %v423
    %522 = vmatprep.subr.bf16.mxu0 %v428
    %523 = vmatpush1.bf16.msra.mxu0 %v427
    %524 = vmatprep.subr.bf16.mxu0 %v432
    %525 = vmatpush1.bf16.msra.mxu0 %v431
    %526 = vmatprep.subr.bf16.mxu0 %v436
    %527 = vmatpush1.bf16.msra.mxu0 %v435
    %528 = vmatprep.subr.bf16.mxu0 %v440
    %529 = vmatpush1.bf16.msra.mxu0 %v439
    %530 = vmatprep.subr.bf16.mxu0 0
    %531 = vmatpush1.bf16.msra.mxu0 0
    %532 = vmatprep.subr.bf16.mxu0 0
    %533 = vmatpush1.bf16.msra.mxu0 0
    %534 = vmatprep.subr.bf16.mxu0 0
    %535 = vmatpush1.bf16.msra.mxu0 0
    %536 = vmatprep.subr.bf16.mxu0 0
    %537 = vmatpush1.bf16.msra.mxu0 0
    %538 = vmatprep.subr.bf16.mxu0 0
    %539 = vmatpush1.bf16.msra.mxu0 0
    %540 = vmatprep.subr.bf16.mxu0 0
    %541 = vmatpush1.bf16.msra.mxu0 0
    %542 = vmatprep.subr.bf16.mxu0 0
    %543 = vmatpush1.bf16.msra.mxu0 0
    %544 = vmatprep.subr.bf16.mxu0 0
    %545 = vmatpush1.bf16.msra.mxu0 0
    %546 = vmatprep.mubr.bf16.mxu0 0
    %547 = vmatmul.mubr.bf16.gmra.mrb[0].mxu0 %v280
    %v548 = vpop.f32.mrb[0].mxu0
    %v549 = vadd.f32 0.0, %v548
    %v550 = vpop.f32.mrb[0].mxu0
    %v551 = vadd.f32 0.0, %v550
    %v552 = vpop.f32.mrb[0].mxu0
    %v553 = vpop.f32.mrb[0].mxu0
    %554 = vdwg.mxu0
    %v587 = vunpack.c.l.b16 %v248
    %v588 = vunpack.c.h.b16 %v248
    %v589 = vunpack.c.l.b16 %v249
    %v590 = vunpack.c.h.b16 %v249
    %v591 = vunpack.c.l.b16 %v250
    %v592 = vunpack.c.h.b16 %v250
    %v593 = vunpack.c.l.b16 %v251
    %v594 = vunpack.c.h.b16 %v251
    %v595 = vunpack.c.l.b16 %v252
    %v596 = vunpack.c.h.b16 %v252
    %v597 = vunpack.c.l.b16 %v253
    %v598 = vunpack.c.h.b16 %v253
    %v599 = vunpack.c.l.b16 %v254
    %v600 = vunpack.c.h.b16 %v254
    %v601 = vunpack.c.l.b16 %v255
    %v602 = vunpack.c.h.b16 %v255
    %v603 = vunpack.c.l.b16 %v256
    %v604 = vunpack.c.h.b16 %v256
    %v605 = vunpack.c.l.b16 %v257
    %v606 = vunpack.c.h.b16 %v257
    %v607 = vunpack.c.l.b16 %v258
    %v608 = vunpack.c.h.b16 %v258
    %v609 = vunpack.c.l.b16 %v259
    %v610 = vunpack.c.h.b16 %v259
    %v611 = vunpack.c.l.b16 %v260
    %v612 = vunpack.c.h.b16 %v260
    %v613 = vunpack.c.l.b16 %v261
    %v614 = vunpack.c.h.b16 %v261
    %v615 = vunpack.c.l.b16 %v262
    %v616 = vunpack.c.h.b16 %v262
    %v617 = vunpack.c.l.b16 %v263
    %v618 = vunpack.c.h.b16 %v263
    %v619 = vunpack.c.l.b16 %v264
    %v620 = vunpack.c.h.b16 %v264
    %v621 = vunpack.c.l.b16 %v265
    %v622 = vunpack.c.h.b16 %v265
    %v623 = vunpack.c.l.b16 %v266
    %v624 = vunpack.c.h.b16 %v266
    %v625 = vunpack.c.l.b16 %v267
    %v626 = vunpack.c.h.b16 %v267
    %v627 = vunpack.c.l.b16 %v268
    %v628 = vunpack.c.h.b16 %v268
    %v629 = vunpack.c.l.b16 %v269
    %v630 = vunpack.c.h.b16 %v269
    %v631 = vunpack.c.l.b16 %v270
    %v632 = vunpack.c.h.b16 %v270
    %v633 = vunpack.c.l.b16 %v271
    %v634 = vunpack.c.h.b16 %v271
    %v635 = vunpack.c.l.b16 %v272
    %v636 = vunpack.c.h.b16 %v272
    %v637 = vunpack.c.l.b16 %v273
    %v638 = vunpack.c.h.b16 %v273
    %v639 = vunpack.c.l.b16 %v274
    %v640 = vunpack.c.h.b16 %v274
    %v641 = vunpack.c.l.b16 %v275
    %v642 = vunpack.c.h.b16 %v275
    %v643 = vunpack.c.l.b16 %v276
    %v644 = vunpack.c.h.b16 %v276
    %v645 = vunpack.c.l.b16 %v277
    %v646 = vunpack.c.h.b16 %v277
    %v647 = vunpack.c.l.b16 %v278
    %v648 = vunpack.c.h.b16 %v278
    %v649 = vunpack.c.l.b16 %v279
    %v650 = vunpack.c.h.b16 %v279
    %v651 = vpack.c.b16 %v591, %v587
    %v652 = vpack.c.b16 %v592, %v588
    %v653 = vpack.c.b16 %v593, %v589
    %v654 = vpack.c.b16 %v594, %v590
    %v655 = vpack.c.b16 %v599, %v595
    %v656 = vpack.c.b16 %v600, %v596
    %v657 = vpack.c.b16 %v601, %v597
    %v658 = vpack.c.b16 %v602, %v598
    %v659 = vpack.c.b16 %v607, %v603
    %v660 = vpack.c.b16 %v608, %v604
    %v661 = vpack.c.b16 %v609, %v605
    %v662 = vpack.c.b16 %v610, %v606
    %v663 = vpack.c.b16 %v615, %v611
    %v664 = vpack.c.b16 %v616, %v612
    %v665 = vpack.c.b16 %v617, %v613
    %v666 = vpack.c.b16 %v618, %v614
    %v667 = vpack.c.b16 %v623, %v619
    %v668 = vpack.c.b16 %v624, %v620
    %v669 = vpack.c.b16 %v625, %v621
    %v670 = vpack.c.b16 %v626, %v622
    %v671 = vpack.c.b16 %v631, %v627
    %v672 = vpack.c.b16 %v632, %v628
    %v673 = vpack.c.b16 %v633, %v629
    %v674 = vpack.c.b16 %v634, %v630
    %v675 = vpack.c.b16 %v639, %v635
    %v676 = vpack.c.b16 %v640, %v636
    %v677 = vpack.c.b16 %v641, %v637
    %v678 = vpack.c.b16 %v642, %v638
    %v679 = vpack.c.b16 %v647, %v643
    %v680 = vpack.c.b16 %v648, %v644
    %v681 = vpack.c.b16 %v649, %v645
    %v682 = vpack.c.b16 %v650, %v646
    %715 = vmatprep.subr.bf16.mxu0 %v652
    %716 = vmatpush1.bf16.msra.mxu0 %v651
    %717 = vmatprep.subr.bf16.mxu0 %v656
    %718 = vmatpush1.bf16.msra.mxu0 %v655
    %719 = vmatprep.subr.bf16.mxu0 %v660
    %720 = vmatpush1.bf16.msra.mxu0 %v659
    %721 = vmatprep.subr.bf16.mxu0 %v664
    %722 = vmatpush1.bf16.msra.mxu0 %v663
    %723 = vmatprep.subr.bf16.mxu0 %v668
    %724 = vmatpush1.bf16.msra.mxu0 %v667
    %725 = vmatprep.subr.bf16.mxu0 %v672
    %726 = vmatpush1.bf16.msra.mxu0 %v671
    %727 = vmatprep.subr.bf16.mxu0 %v676
    %728 = vmatpush1.bf16.msra.mxu0 %v675
    %729 = vmatprep.subr.bf16.mxu0 %v680
    %730 = vmatpush1.bf16.msra.mxu0 %v679
    %731 = vmatprep.subr.bf16.mxu0 0
    %732 = vmatpush1.bf16.msra.mxu0 0
    %733 = vmatprep.subr.bf16.mxu0 0
    %734 = vmatpush1.bf16.msra.mxu0 0
    %735 = vmatprep.subr.bf16.mxu0 0
    %736 = vmatpush1.bf16.msra.mxu0 0
    %737 = vmatprep.subr.bf16.mxu0 0
    %738 = vmatpush1.bf16.msra.mxu0 0
    %739 = vmatprep.subr.bf16.mxu0 0
    %740 = vmatpush1.bf16.msra.mxu0 0
    %741 = vmatprep.subr.bf16.mxu0 0
    %742 = vmatpush1.bf16.msra.mxu0 0
    %743 = vmatprep.subr.bf16.mxu0 0
    %744 = vmatpush1.bf16.msra.mxu0 0
    %745 = vmatprep.subr.bf16.mxu0 0
    %746 = vmatpush1.bf16.msra.mxu0 0
    %747 = vmatprep.mubr.bf16.mxu0 0
    %748 = vmatmul.mubr.bf16.gmra.mrb[0].mxu0 %v245
    %v749 = vpop.f32.mrb[0].mxu0
    %v750 = vadd.f32 %v508, %v749
    %v751 = vpop.f32.mrb[0].mxu0
    %v752 = vadd.f32 %v510, %v751
    %v753 = vpop.f32.mrb[0].mxu0
    %v754 = vpop.f32.mrb[0].mxu0
    %755 = vdwg.mxu0
    %756 = vmatprep.subr.bf16.mxu0 %v654
    %757 = vmatpush1.bf16.msra.mxu0 %v653
    %758 = vmatprep.subr.bf16.mxu0 %v658
    %759 = vmatpush1.bf16.msra.mxu0 %v657
    %760 = vmatprep.subr.bf16.mxu0 %v662
    %761 = vmatpush1.bf16.msra.mxu0 %v661
    %762 = vmatprep.subr.bf16.mxu0 %v666
    %763 = vmatpush1.bf16.msra.mxu0 %v665
    %764 = vmatprep.subr.bf16.mxu0 %v670
    %765 = vmatpush1.bf16.msra.mxu0 %v669
    %766 = vmatprep.subr.bf16.mxu0 %v674
    %767 = vmatpush1.bf16.msra.mxu0 %v673
    %768 = vmatprep.subr.bf16.mxu0 %v678
    %769 = vmatpush1.bf16.msra.mxu0 %v677
    %770 = vmatprep.subr.bf16.mxu0 %v682
    %771 = vmatpush1.bf16.msra.mxu0 %v681
    %772 = vmatprep.subr.bf16.mxu0 0
    %773 = vmatpush1.bf16.msra.mxu0 0
    %774 = vmatprep.subr.bf16.mxu0 0
    %775 = vmatpush1.bf16.msra.mxu0 0
    %776 = vmatprep.subr.bf16.mxu0 0
    %777 = vmatpush1.bf16.msra.mxu0 0
    %778 = vmatprep.subr.bf16.mxu0 0
    %779 = vmatpush1.bf16.msra.mxu0 0
    %780 = vmatprep.subr.bf16.mxu0 0
    %781 = vmatpush1.bf16.msra.mxu0 0
    %782 = vmatprep.subr.bf16.mxu0 0
    %783 = vmatpush1.bf16.msra.mxu0 0
    %784 = vmatprep.subr.bf16.mxu0 0
    %785 = vmatpush1.bf16.msra.mxu0 0
    %786 = vmatprep.subr.bf16.mxu0 0
    %787 = vmatpush1.bf16.msra.mxu0 0
    %788 = vmatprep.mubr.bf16.mxu0 0
    %789 = vmatmul.mubr.bf16.gmra.mrb[0].mxu0 %v245
    %v790 = vpop.f32.mrb[0].mxu0
    %v791 = vadd.f32 %v549, %v790
    %v792 = vpop.f32.mrb[0].mxu0
    %v793 = vadd.f32 %v551, %v792
    %v794 = vpop.f32.mrb[0].mxu0
    %v795 = vpop.f32.mrb[0].mxu0
    %796 = vdwg.mxu0
    %v797 = vld [vmem:[#allocation11] sm:$0xf]
    %v799 = vlaneseq
    %v800 = vshrl.u32 %v799, 7
    %v801 = vsub.s32 0, %v800
    %v802 = vrot.slane %v797, %v801
    %v803 = vlaneseq
    %v804 = vshrl.u32 %v803, 7
    %v805 = vsub.s32 1, %v804
    %v806 = vrot.slane %v797, %v805
    %v807 = vlaneseq
    %v808 = vshrl.u32 %v807, 7
    %v809 = vsub.s32 2, %v808
    %v810 = vrot.slane %v797, %v809
    %v811 = vlaneseq
    %v812 = vshrl.u32 %v811, 7
    %v813 = vsub.s32 3, %v812
    %v814 = vrot.slane %v797, %v813
    %v819 = vadd.f32 %v750, %v802
    %v820 = vadd.f32 %v752, %v806
    %v821 = vadd.f32 %v791, %v810
    %v822 = vadd.f32 %v793, %v814
    %v823 = vxor.u32 %v819, 2147483648
    %v824 = vmul.f32 %v823, 1.442695
    %v825 = vpow.pop %v824
    %v826 = vadd.f32 %v825, 1.0
    %v827 = vrcp.pop %v826
    %v828 = vmul.f32 1.0, %v827
    %v829 = vxor.u32 %v820, 2147483648
    %v830 = vmul.f32 %v829, 1.442695
    %v831 = vpow.pop %v830
    %v832 = vadd.f32 %v831, 1.0
    %v833 = vrcp.pop %v832
    %v834 = vmul.f32 1.0, %v833
    %v835 = vtanh.pop %v821
    %v836 = vxor.u32 %v822, 2147483648
    %v837 = vmul.f32 %v836, 1.442695
    %v838 = vpow.pop %v837
    %v839 = vadd.f32 %v838, 1.0
    %v840 = vrcp.pop %v839
    %v841 = vmul.f32 1.0, %v840
    %v842 = vmul.f32 %v834, %v247
    %v843 = vmul.f32 %v828, %v835
    %v844 = vadd.f32 %v842, %v843
    %v845 = vtanh.pop %v844
    %v846 = vmul.f32 %v841, %v845
    %847 = vst [vmem:[%s10] sm:$0xff] %v846
    %848 = vst [vmem:[%s11] sm:$0xff] %v844
    %v849 = vpack.c.bf16 %v846, %v846
    %s850 = scalar_lea.vmem %s7, 8
    %v851 = vld [vmem:[%s850] sm:$0xff]
    %s852 = scalar_lea.vmem %s8, 8
    %v853 = vld [vmem:[%s852] sm:$0xff]
    %s854 = scalar_lea.vmem [#allocation8], 256
    %v855 = vld [vmem:[%s854] sm:$0xff]
    %v856 = vld [vmem:[%s854 + $0x8] sm:$0xff]
    %v857 = vld [vmem:[%s854 + $0x10] sm:$0xff]
    %v858 = vld [vmem:[%s854 + $0x18] sm:$0xff]
    %v859 = vld [vmem:[%s854 + $0x20] sm:$0xff]
    %v860 = vld [vmem:[%s854 + $0x28] sm:$0xff]
    %v861 = vld [vmem:[%s854 + $0x30] sm:$0xff]
    %v862 = vld [vmem:[%s854 + $0x38] sm:$0xff]
    %v863 = vld [vmem:[%s854 + $0x40] sm:$0xff]
    %v864 = vld [vmem:[%s854 + $0x48] sm:$0xff]
    %v865 = vld [vmem:[%s854 + $0x50] sm:$0xff]
    %v866 = vld [vmem:[%s854 + $0x58] sm:$0xff]
    %v867 = vld [vmem:[%s854 + $0x60] sm:$0xff]
    %v868 = vld [vmem:[%s854 + $0x68] sm:$0xff]
    %v869 = vld [vmem:[%s854 + $0x70] sm:$0xff]
    %v870 = vld [vmem:[%s854 + $0x78] sm:$0xff]
    %v871 = vld [vmem:[%s854 + $0x80] sm:$0xff]
    %v872 = vld [vmem:[%s854 + $0x88] sm:$0xff]
    %v873 = vld [vmem:[%s854 + $0x90] sm:$0xff]
    %v874 = vld [vmem:[%s854 + $0x98] sm:$0xff]
    %v875 = vld [vmem:[%s854 + $0xa0] sm:$0xff]
    %v876 = vld [vmem:[%s854 + $0xa8] sm:$0xff]
    %v877 = vld [vmem:[%s854 + $0xb0] sm:$0xff]
    %v878 = vld [vmem:[%s854 + $0xb8] sm:$0xff]
    %v879 = vld [vmem:[%s854 + $0xc0] sm:$0xff]
    %v880 = vld [vmem:[%s854 + $0xc8] sm:$0xff]
    %v881 = vld [vmem:[%s854 + $0xd0] sm:$0xff]
    %v882 = vld [vmem:[%s854 + $0xd8] sm:$0xff]
    %v883 = vld [vmem:[%s854 + $0xe0] sm:$0xff]
    %v884 = vld [vmem:[%s854 + $0xe8] sm:$0xff]
    %v885 = vld [vmem:[%s854 + $0xf0] sm:$0xff]
    %v886 = vld [vmem:[%s854 + $0xf8] sm:$0xff]
    %v887 = vpack.c.bf16 %v851, %v851
    %s888 = scalar_lea.vmem [#allocation9], 256
    %v889 = vld [vmem:[%s888] sm:$0xff]
    %v890 = vld [vmem:[%s888 + $0x8] sm:$0xff]
    %v891 = vld [vmem:[%s888 + $0x10] sm:$0xff]
    %v892 = vld [vmem:[%s888 + $0x18] sm:$0xff]
    %v893 = vld [vmem:[%s888 + $0x20] sm:$0xff]
    %v894 = vld [vmem:[%s888 + $0x28] sm:$0xff]
    %v895 = vld [vmem:[%s888 + $0x30] sm:$0xff]
    %v896 = vld [vmem:[%s888 + $0x38] sm:$0xff]
    %v897 = vld [vmem:[%s888 + $0x40] sm:$0xff]
    %v898 = vld [vmem:[%s888 + $0x48] sm:$0xff]
    %v899 = vld [vmem:[%s888 + $0x50] sm:$0xff]
    %v900 = vld [vmem:[%s888 + $0x58] sm:$0xff]
    %v901 = vld [vmem:[%s888 + $0x60] sm:$0xff]
    %v902 = vld [vmem:[%s888 + $0x68] sm:$0xff]
    %v903 = vld [vmem:[%s888 + $0x70] sm:$0xff]
    %v904 = vld [vmem:[%s888 + $0x78] sm:$0xff]
    %v905 = vld [vmem:[%s888 + $0x80] sm:$0xff]
    %v906 = vld [vmem:[%s888 + $0x88] sm:$0xff]
    %v907 = vld [vmem:[%s888 + $0x90] sm:$0xff]
    %v908 = vld [vmem:[%s888 + $0x98] sm:$0xff]
    %v909 = vld [vmem:[%s888 + $0xa0] sm:$0xff]
    %v910 = vld [vmem:[%s888 + $0xa8] sm:$0xff]
    %v911 = vld [vmem:[%s888 + $0xb0] sm:$0xff]
    %v912 = vld [vmem:[%s888 + $0xb8] sm:$0xff]
    %v913 = vld [vmem:[%s888 + $0xc0] sm:$0xff]
    %v914 = vld [vmem:[%s888 + $0xc8] sm:$0xff]
    %v915 = vld [vmem:[%s888 + $0xd0] sm:$0xff]
    %v916 = vld [vmem:[%s888 + $0xd8] sm:$0xff]
    %v917 = vld [vmem:[%s888 + $0xe0] sm:$0xff]
    %v918 = vld [vmem:[%s888 + $0xe8] sm:$0xff]
    %v919 = vld [vmem:[%s888 + $0xf0] sm:$0xff]
    %v920 = vld [vmem:[%s888 + $0xf8] sm:$0xff]
    %v953 = vunpack.c.l.b16 %v889
    %v954 = vunpack.c.h.b16 %v889
    %v955 = vunpack.c.l.b16 %v890
    %v956 = vunpack.c.h.b16 %v890
    %v957 = vunpack.c.l.b16 %v891
    %v958 = vunpack.c.h.b16 %v891
    %v959 = vunpack.c.l.b16 %v892
    %v960 = vunpack.c.h.b16 %v892
    %v961 = vunpack.c.l.b16 %v893
    %v962 = vunpack.c.h.b16 %v893
    %v963 = vunpack.c.l.b16 %v894
    %v964 = vunpack.c.h.b16 %v894
    %v965 = vunpack.c.l.b16 %v895
    %v966 = vunpack.c.h.b16 %v895
    %v967 = vunpack.c.l.b16 %v896
    %v968 = vunpack.c.h.b16 %v896
    %v969 = vunpack.c.l.b16 %v897
    %v970 = vunpack.c.h.b16 %v897
    %v971 = vunpack.c.l.b16 %v898
    %v972 = vunpack.c.h.b16 %v898
    %v973 = vunpack.c.l.b16 %v899
    %v974 = vunpack.c.h.b16 %v899
    %v975 = vunpack.c.l.b16 %v900
    %v976 = vunpack.c.h.b16 %v900
    %v977 = vunpack.c.l.b16 %v901
    %v978 = vunpack.c.h.b16 %v901
    %v979 = vunpack.c.l.b16 %v902
    %v980 = vunpack.c.h.b16 %v902
    %v981 = vunpack.c.l.b16 %v903
    %v982 = vunpack.c.h.b16 %v903
    %v983 = vunpack.c.l.b16 %v904
    %v984 = vunpack.c.h.b16 %v904
    %v985 = vunpack.c.l.b16 %v905
    %v986 = vunpack.c.h.b16 %v905
    %v987 = vunpack.c.l.b16 %v906
    %v988 = vunpack.c.h.b16 %v906
    %v989 = vunpack.c.l.b16 %v907
    %v990 = vunpack.c.h.b16 %v907
    %v991 = vunpack.c.l.b16 %v908
    %v992 = vunpack.c.h.b16 %v908
    %v993 = vunpack.c.l.b16 %v909
    %v994 = vunpack.c.h.b16 %v909
    %v995 = vunpack.c.l.b16 %v910
    %v996 = vunpack.c.h.b16 %v910
    %v997 = vunpack.c.l.b16 %v911
    %v998 = vunpack.c.h.b16 %v911
    %v999 = vunpack.c.l.b16 %v912
    %v1000 = vunpack.c.h.b16 %v912
    %v1001 = vunpack.c.l.b16 %v913
    %v1002 = vunpack.c.h.b16 %v913
    %v1003 = vunpack.c.l.b16 %v914
    %v1004 = vunpack.c.h.b16 %v914
    %v1005 = vunpack.c.l.b16 %v915
    %v1006 = vunpack.c.h.b16 %v915
    %v1007 = vunpack.c.l.b16 %v916
    %v1008 = vunpack.c.h.b16 %v916
    %v1009 = vunpack.c.l.b16 %v917
    %v1010 = vunpack.c.h.b16 %v917
    %v1011 = vunpack.c.l.b16 %v918
    %v1012 = vunpack.c.h.b16 %v918
    %v1013 = vunpack.c.l.b16 %v919
    %v1014 = vunpack.c.h.b16 %v919
    %v1015 = vunpack.c.l.b16 %v920
    %v1016 = vunpack.c.h.b16 %v920
    %v1017 = vpack.c.b16 %v957, %v953
    %v1018 = vpack.c.b16 %v958, %v954
    %v1019 = vpack.c.b16 %v959, %v955
    %v1020 = vpack.c.b16 %v960, %v956
    %v1021 = vpack.c.b16 %v965, %v961
    %v1022 = vpack.c.b16 %v966, %v962
    %v1023 = vpack.c.b16 %v967, %v963
    %v1024 = vpack.c.b16 %v968, %v964
    %v1025 = vpack.c.b16 %v973, %v969
    %v1026 = vpack.c.b16 %v974, %v970
    %v1027 = vpack.c.b16 %v975, %v971
    %v1028 = vpack.c.b16 %v976, %v972
    %v1029 = vpack.c.b16 %v981, %v977
    %v1030 = vpack.c.b16 %v982, %v978
    %v1031 = vpack.c.b16 %v983, %v979
    %v1032 = vpack.c.b16 %v984, %v980
    %v1033 = vpack.c.b16 %v989, %v985
    %v1034 = vpack.c.b16 %v990, %v986
    %v1035 = vpack.c.b16 %v991, %v987
    %v1036 = vpack.c.b16 %v992, %v988
    %v1037 = vpack.c.b16 %v997, %v993
    %v1038 = vpack.c.b16 %v998, %v994
    %v1039 = vpack.c.b16 %v999, %v995
    %v1040 = vpack.c.b16 %v1000, %v996
    %v1041 = vpack.c.b16 %v1005, %v1001
    %v1042 = vpack.c.b16 %v1006, %v1002
    %v1043 = vpack.c.b16 %v1007, %v1003
    %v1044 = vpack.c.b16 %v1008, %v1004
    %v1045 = vpack.c.b16 %v1013, %v1009
    %v1046 = vpack.c.b16 %v1014, %v1010
    %v1047 = vpack.c.b16 %v1015, %v1011
    %v1048 = vpack.c.b16 %v1016, %v1012
    %1081 = vmatprep.subr.bf16.mxu0 %v1018
    %1082 = vmatpush1.bf16.msra.mxu0 %v1017
    %1083 = vmatprep.subr.bf16.mxu0 %v1022
    %1084 = vmatpush1.bf16.msra.mxu0 %v1021
    %1085 = vmatprep.subr.bf16.mxu0 %v1026
    %1086 = vmatpush1.bf16.msra.mxu0 %v1025
    %1087 = vmatprep.subr.bf16.mxu0 %v1030
    %1088 = vmatpush1.bf16.msra.mxu0 %v1029
    %1089 = vmatprep.subr.bf16.mxu0 %v1034
    %1090 = vmatpush1.bf16.msra.mxu0 %v1033
    %1091 = vmatprep.subr.bf16.mxu0 %v1038
    %1092 = vmatpush1.bf16.msra.mxu0 %v1037
    %1093 = vmatprep.subr.bf16.mxu0 %v1042
    %1094 = vmatpush1.bf16.msra.mxu0 %v1041
    %1095 = vmatprep.subr.bf16.mxu0 %v1046
    %1096 = vmatpush1.bf16.msra.mxu0 %v1045
    %1097 = vmatprep.subr.bf16.mxu0 0
    %1098 = vmatpush1.bf16.msra.mxu0 0
    %1099 = vmatprep.subr.bf16.mxu0 0
    %1100 = vmatpush1.bf16.msra.mxu0 0
    %1101 = vmatprep.subr.bf16.mxu0 0
    %1102 = vmatpush1.bf16.msra.mxu0 0
    %1103 = vmatprep.subr.bf16.mxu0 0
    %1104 = vmatpush1.bf16.msra.mxu0 0
    %1105 = vmatprep.subr.bf16.mxu0 0
    %1106 = vmatpush1.bf16.msra.mxu0 0
    %1107 = vmatprep.subr.bf16.mxu0 0
    %1108 = vmatpush1.bf16.msra.mxu0 0
    %1109 = vmatprep.subr.bf16.mxu0 0
    %1110 = vmatpush1.bf16.msra.mxu0 0
    %1111 = vmatprep.subr.bf16.mxu0 0
    %1112 = vmatpush1.bf16.msra.mxu0 0
    %1113 = vmatprep.mubr.bf16.mxu0 0
    %1114 = vmatmul.mubr.bf16.gmra.mrb[0].mxu0 %v887
    %v1115 = vpop.f32.mrb[0].mxu0
    %v1116 = vadd.f32 0.0, %v1115
    %v1117 = vpop.f32.mrb[0].mxu0
    %v1118 = vadd.f32 0.0, %v1117
    %v1119 = vpop.f32.mrb[0].mxu0
    %v1120 = vpop.f32.mrb[0].mxu0
    %1121 = vdwg.mxu0
    %1122 = vmatprep.subr.bf16.mxu0 %v1020
    %1123 = vmatpush1.bf16.msra.mxu0 %v1019
    %1124 = vmatprep.subr.bf16.mxu0 %v1024
    %1125 = vmatpush1.bf16.msra.mxu0 %v1023
    %1126 = vmatprep.subr.bf16.mxu0 %v1028
    %1127 = vmatpush1.bf16.msra.mxu0 %v1027
    %1128 = vmatprep.subr.bf16.mxu0 %v1032
    %1129 = vmatpush1.bf16.msra.mxu0 %v1031
    %1130 = vmatprep.subr.bf16.mxu0 %v1036
    %1131 = vmatpush1.bf16.msra.mxu0 %v1035
    %1132 = vmatprep.subr.bf16.mxu0 %v1040
    %1133 = vmatpush1.bf16.msra.mxu0 %v1039
    %1134 = vmatprep.subr.bf16.mxu0 %v1044
    %1135 = vmatpush1.bf16.msra.mxu0 %v1043
    %1136 = vmatprep.subr.bf16.mxu0 %v1048
    %1137 = vmatpush1.bf16.msra.mxu0 %v1047
    %1138 = vmatprep.subr.bf16.mxu0 0
    %1139 = vmatpush1.bf16.msra.mxu0 0
    %1140 = vmatprep.subr.bf16.mxu0 0
    %1141 = vmatpush1.bf16.msra.mxu0 0
    %1142 = vmatprep.subr.bf16.mxu0 0
    %1143 = vmatpush1.bf16.msra.mxu0 0
    %1144 = vmatprep.subr.bf16.mxu0 0
    %1145 = vmatpush1.bf16.msra.mxu0 0
    %1146 = vmatprep.subr.bf16.mxu0 0
    %1147 = vmatpush1.bf16.msra.mxu0 0
    %1148 = vmatprep.subr.bf16.mxu0 0
    %1149 = vmatpush1.bf16.msra.mxu0 0
    %1150 = vmatprep.subr.bf16.mxu0 0
    %1151 = vmatpush1.bf16.msra.mxu0 0
    %1152 = vmatprep.subr.bf16.mxu0 0
    %1153 = vmatpush1.bf16.msra.mxu0 0
    %1154 = vmatprep.mubr.bf16.mxu0 0
    %1155 = vmatmul.mubr.bf16.gmra.mrb[0].mxu0 %v887
    %v1156 = vpop.f32.mrb[0].mxu0
    %v1157 = vadd.f32 0.0, %v1156
    %v1158 = vpop.f32.mrb[0].mxu0
    %v1159 = vadd.f32 0.0, %v1158
    %v1160 = vpop.f32.mrb[0].mxu0
    %v1161 = vpop.f32.mrb[0].mxu0
    %1162 = vdwg.mxu0
    %v1195 = vunpack.c.l.b16 %v855
    %v1196 = vunpack.c.h.b16 %v855
    %v1197 = vunpack.c.l.b16 %v856
    %v1198 = vunpack.c.h.b16 %v856
    %v1199 = vunpack.c.l.b16 %v857
    %v1200 = vunpack.c.h.b16 %v857
    %v1201 = vunpack.c.l.b16 %v858
    %v1202 = vunpack.c.h.b16 %v858
    %v1203 = vunpack.c.l.b16 %v859
    %v1204 = vunpack.c.h.b16 %v859
    %v1205 = vunpack.c.l.b16 %v860
    %v1206 = vunpack.c.h.b16 %v860
    %v1207 = vunpack.c.l.b16 %v861
    %v1208 = vunpack.c.h.b16 %v861
    %v1209 = vunpack.c.l.b16 %v862
    %v1210 = vunpack.c.h.b16 %v862
    %v1211 = vunpack.c.l.b16 %v863
    %v1212 = vunpack.c.h.b16 %v863
    %v1213 = vunpack.c.l.b16 %v864
    %v1214 = vunpack.c.h.b16 %v864
    %v1215 = vunpack.c.l.b16 %v865
    %v1216 = vunpack.c.h.b16 %v865
    %v1217 = vunpack.c.l.b16 %v866
    %v1218 = vunpack.c.h.b16 %v866
    %v1219 = vunpack.c.l.b16 %v867
    %v1220 = vunpack.c.h.b16 %v867
    %v1221 = vunpack.c.l.b16 %v868
    %v1222 = vunpack.c.h.b16 %v868
    %v1223 = vunpack.c.l.b16 %v869
    %v1224 = vunpack.c.h.b16 %v869
    %v1225 = vunpack.c.l.b16 %v870
    %v1226 = vunpack.c.h.b16 %v870
    %v1227 = vunpack.c.l.b16 %v871
    %v1228 = vunpack.c.h.b16 %v871
    %v1229 = vunpack.c.l.b16 %v872
    %v1230 = vunpack.c.h.b16 %v872
    %v1231 = vunpack.c.l.b16 %v873
    %v1232 = vunpack.c.h.b16 %v873
    %v1233 = vunpack.c.l.b16 %v874
    %v1234 = vunpack.c.h.b16 %v874
    %v1235 = vunpack.c.l.b16 %v875
    %v1236 = vunpack.c.h.b16 %v875
    %v1237 = vunpack.c.l.b16 %v876
    %v1238 = vunpack.c.h.b16 %v876
    %v1239 = vunpack.c.l.b16 %v877
    %v1240 = vunpack.c.h.b16 %v877
    %v1241 = vunpack.c.l.b16 %v878
    %v1242 = vunpack.c.h.b16 %v878
    %v1243 = vunpack.c.l.b16 %v879
    %v1244 = vunpack.c.h.b16 %v879
    %v1245 = vunpack.c.l.b16 %v880
    %v1246 = vunpack.c.h.b16 %v880
    %v1247 = vunpack.c.l.b16 %v881
    %v1248 = vunpack.c.h.b16 %v881
    %v1249 = vunpack.c.l.b16 %v882
    %v1250 = vunpack.c.h.b16 %v882
    %v1251 = vunpack.c.l.b16 %v883
    %v1252 = vunpack.c.h.b16 %v883
    %v1253 = vunpack.c.l.b16 %v884
    %v1254 = vunpack.c.h.b16 %v884
    %v1255 = vunpack.c.l.b16 %v885
    %v1256 = vunpack.c.h.b16 %v885
    %v1257 = vunpack.c.l.b16 %v886
    %v1258 = vunpack.c.h.b16 %v886
    %v1259 = vpack.c.b16 %v1199, %v1195
    %v1260 = vpack.c.b16 %v1200, %v1196
    %v1261 = vpack.c.b16 %v1201, %v1197
    %v1262 = vpack.c.b16 %v1202, %v1198
    %v1263 = vpack.c.b16 %v1207, %v1203
    %v1264 = vpack.c.b16 %v1208, %v1204
    %v1265 = vpack.c.b16 %v1209, %v1205
    %v1266 = vpack.c.b16 %v1210, %v1206
    %v1267 = vpack.c.b16 %v1215, %v1211
    %v1268 = vpack.c.b16 %v1216, %v1212
    %v1269 = vpack.c.b16 %v1217, %v1213
    %v1270 = vpack.c.b16 %v1218, %v1214
    %v1271 = vpack.c.b16 %v1223, %v1219
    %v1272 = vpack.c.b16 %v1224, %v1220
    %v1273 = vpack.c.b16 %v1225, %v1221
    %v1274 = vpack.c.b16 %v1226, %v1222
    %v1275 = vpack.c.b16 %v1231, %v1227
    %v1276 = vpack.c.b16 %v1232, %v1228
    %v1277 = vpack.c.b16 %v1233, %v1229
    %v1278 = vpack.c.b16 %v1234, %v1230
    %v1279 = vpack.c.b16 %v1239, %v1235
    %v1280 = vpack.c.b16 %v1240, %v1236
    %v1281 = vpack.c.b16 %v1241, %v1237
    %v1282 = vpack.c.b16 %v1242, %v1238
    %v1283 = vpack.c.b16 %v1247, %v1243
    %v1284 = vpack.c.b16 %v1248, %v1244
    %v1285 = vpack.c.b16 %v1249, %v1245
    %v1286 = vpack.c.b16 %v1250, %v1246
    %v1287 = vpack.c.b16 %v1255, %v1251
    %v1288 = vpack.c.b16 %v1256, %v1252
    %v1289 = vpack.c.b16 %v1257, %v1253
    %v1290 = vpack.c.b16 %v1258, %v1254
    %1323 = vmatprep.subr.bf16.mxu0 %v1260
    %1324 = vmatpush1.bf16.msra.mxu0 %v1259
    %1325 = vmatprep.subr.bf16.mxu0 %v1264
    %1326 = vmatpush1.bf16.msra.mxu0 %v1263
    %1327 = vmatprep.subr.bf16.mxu0 %v1268
    %1328 = vmatpush1.bf16.msra.mxu0 %v1267
    %1329 = vmatprep.subr.bf16.mxu0 %v1272
    %1330 = vmatpush1.bf16.msra.mxu0 %v1271
    %1331 = vmatprep.subr.bf16.mxu0 %v1276
    %1332 = vmatpush1.bf16.msra.mxu0 %v1275
    %1333 = vmatprep.subr.bf16.mxu0 %v1280
    %1334 = vmatpush1.bf16.msra.mxu0 %v1279
    %1335 = vmatprep.subr.bf16.mxu0 %v1284
    %1336 = vmatpush1.bf16.msra.mxu0 %v1283
    %1337 = vmatprep.subr.bf16.mxu0 %v1288
    %1338 = vmatpush1.bf16.msra.mxu0 %v1287
    %1339 = vmatprep.subr.bf16.mxu0 0
    %1340 = vmatpush1.bf16.msra.mxu0 0
    %1341 = vmatprep.subr.bf16.mxu0 0
    %1342 = vmatpush1.bf16.msra.mxu0 0
    %1343 = vmatprep.subr.bf16.mxu0 0
    %1344 = vmatpush1.bf16.msra.mxu0 0
    %1345 = vmatprep.subr.bf16.mxu0 0
    %1346 = vmatpush1.bf16.msra.mxu0 0
    %1347 = vmatprep.subr.bf16.mxu0 0
    %1348 = vmatpush1.bf16.msra.mxu0 0
    %1349 = vmatprep.subr.bf16.mxu0 0
    %1350 = vmatpush1.bf16.msra.mxu0 0
    %1351 = vmatprep.subr.bf16.mxu0 0
    %1352 = vmatpush1.bf16.msra.mxu0 0
    %1353 = vmatprep.subr.bf16.mxu0 0
    %1354 = vmatpush1.bf16.msra.mxu0 0
    %1355 = vmatprep.mubr.bf16.mxu0 0
    %1356 = vmatmul.mubr.bf16.gmra.mrb[0].mxu0 %v849
    %v1357 = vpop.f32.mrb[0].mxu0
    %v1358 = vadd.f32 %v1116, %v1357
    %v1359 = vpop.f32.mrb[0].mxu0
    %v1360 = vadd.f32 %v1118, %v1359
    %v1361 = vpop.f32.mrb[0].mxu0
    %v1362 = vpop.f32.mrb[0].mxu0
    %1363 = vdwg.mxu0
    %1364 = vmatprep.subr.bf16.mxu0 %v1262
    %1365 = vmatpush1.bf16.msra.mxu0 %v1261
    %1366 = vmatprep.subr.bf16.mxu0 %v1266
    %1367 = vmatpush1.bf16.msra.mxu0 %v1265
    %1368 = vmatprep.subr.bf16.mxu0 %v1270
    %1369 = vmatpush1.bf16.msra.mxu0 %v1269
    %1370 = vmatprep.subr.bf16.mxu0 %v1274
    %1371 = vmatpush1.bf16.msra.mxu0 %v1273
    %1372 = vmatprep.subr.bf16.mxu0 %v1278
    %1373 = vmatpush1.bf16.msra.mxu0 %v1277
    %1374 = vmatprep.subr.bf16.mxu0 %v1282
    %1375 = vmatpush1.bf16.msra.mxu0 %v1281
    %1376 = vmatprep.subr.bf16.mxu0 %v1286
    %1377 = vmatpush1.bf16.msra.mxu0 %v1285
    %1378 = vmatprep.subr.bf16.mxu0 %v1290
    %1379 = vmatpush1.bf16.msra.mxu0 %v1289
    %1380 = vmatprep.subr.bf16.mxu0 0
    %1381 = vmatpush1.bf16.msra.mxu0 0
    %1382 = vmatprep.subr.bf16.mxu0 0
    %1383 = vmatpush1.bf16.msra.mxu0 0
    %1384 = vmatprep.subr.bf16.mxu0 0
    %1385 = vmatpush1.bf16.msra.mxu0 0
    %1386 = vmatprep.subr.bf16.mxu0 0
    %1387 = vmatpush1.bf16.msra.mxu0 0
    %1388 = vmatprep.subr.bf16.mxu0 0
    %1389 = vmatpush1.bf16.msra.mxu0 0
    %1390 = vmatprep.subr.bf16.mxu0 0
    %1391 = vmatpush1.bf16.msra.mxu0 0
    %1392 = vmatprep.subr.bf16.mxu0 0
    %1393 = vmatpush1.bf16.msra.mxu0 0
    %1394 = vmatprep.subr.bf16.mxu0 0
    %1395 = vmatpush1.bf16.msra.mxu0 0
    %1396 = vmatprep.mubr.bf16.mxu0 0
    %1397 = vmatmul.mubr.bf16.gmra.mrb[0].mxu0 %v849
    %v1398 = vpop.f32.mrb[0].mxu0
    %v1399 = vadd.f32 %v1157, %v1398
    %v1400 = vpop.f32.mrb[0].mxu0
    %v1401 = vadd.f32 %v1159, %v1400
    %v1402 = vpop.f32.mrb[0].mxu0
    %v1403 = vpop.f32.mrb[0].mxu0
    %1404 = vdwg.mxu0
    %s1405 = scalar_lea.vmem [#allocation11], 4
    %v1406 = vld [vmem:[%s1405] sm:$0xf]
    %v1408 = vlaneseq
    %v1409 = vshrl.u32 %v1408, 7
    %v1410 = vsub.s32 0, %v1409
    %v1411 = vrot.slane %v1406, %v1410
    %v1412 = vlaneseq
    %v1413 = vshrl.u32 %v1412, 7
    %v1414 = vsub.s32 1, %v1413
    %v1415 = vrot.slane %v1406, %v1414
    %v1416 = vlaneseq
    %v1417 = vshrl.u32 %v1416, 7
    %v1418 = vsub.s32 2, %v1417
    %v1419 = vrot.slane %v1406, %v1418
    %v1420 = vlaneseq
    %v1421 = vshrl.u32 %v1420, 7
    %v1422 = vsub.s32 3, %v1421
    %v1423 = vrot.slane %v1406, %v1422
    %v1428 = vadd.f32 %v1358, %v1411
    %v1429 = vadd.f32 %v1360, %v1415
    %v1430 = vadd.f32 %v1399, %v1419
    %v1431 = vadd.f32 %v1401, %v1423
    %v1432 = vxor.u32 %v1428, 2147483648
    %v1433 = vmul.f32 %v1432, 1.442695
    %v1434 = vpow.pop %v1433
    %v1435 = vadd.f32 %v1434, 1.0
    %v1436 = vrcp.pop %v1435
    %v1437 = vmul.f32 1.0, %v1436
    %v1438 = vxor.u32 %v1429, 2147483648
    %v1439 = vmul.f32 %v1438, 1.442695
    %v1440 = vpow.pop %v1439
    %v1441 = vadd.f32 %v1440, 1.0
    %v1442 = vrcp.pop %v1441
    %v1443 = vmul.f32 1.0, %v1442
    %v1444 = vtanh.pop %v1430
    %v1445 = vxor.u32 %v1431, 2147483648
    %v1446 = vmul.f32 %v1445, 1.442695
    %v1447 = vpow.pop %v1446
    %v1448 = vadd.f32 %v1447, 1.0
    %v1449 = vrcp.pop %v1448
    %v1450 = vmul.f32 1.0, %v1449
    %v1451 = vmul.f32 %v1443, %v853
    %v1452 = vmul.f32 %v1437, %v1444
    %v1453 = vadd.f32 %v1451, %v1452
    %v1454 = vtanh.pop %v1453
    %v1455 = vmul.f32 %v1450, %v1454
    %s1456 = scalar_lea.vmem %s10, 8
    %1457 = vst [vmem:[%s1456] sm:$0xff] %v1455
    %s1458 = scalar_lea.vmem %s11, 8
    %1459 = vst [vmem:[%s1458] sm:$0xff] %v1453
    %v1460 = vpack.c.bf16 %v1455, %v1455
    %v1461 = vld [vmem:[%s5] sm:$0xf]
    %v1462 = vld [vmem:[%s5 + $0x4] sm:$0xf]
    %v1463 = vld [vmem:[%s5 + $0x8] sm:$0xf]
    %v1464 = vld [vmem:[%s5 + $0xc] sm:$0xf]
    %v1465 = vld [vmem:[%s5 + $0x10] sm:$0xf]
    %v1466 = vld [vmem:[%s5 + $0x14] sm:$0xf]
    %v1467 = vld [vmem:[%s5 + $0x18] sm:$0xf]
    %v1468 = vld [vmem:[%s5 + $0x1c] sm:$0xf]
    %v1469 = vld [vmem:[%s5 + $0x20] sm:$0xf]
    %v1470 = vld [vmem:[%s5 + $0x24] sm:$0xf]
    %v1471 = vld [vmem:[%s5 + $0x28] sm:$0xf]
    %v1472 = vld [vmem:[%s5 + $0x2c] sm:$0xf]
    %v1473 = vld [vmem:[%s5 + $0x30] sm:$0xf]
    %v1474 = vld [vmem:[%s5 + $0x34] sm:$0xf]
    %v1475 = vld [vmem:[%s5 + $0x38] sm:$0xf]
    %v1476 = vld [vmem:[%s5 + $0x3c] sm:$0xf]
    %v1477 = vld [vmem:[#allocation12] sm:$0x1]
    %v1479 = vlaneseq
    %v1480 = vshrl.u32 %v1479, 7
    %v1481 = vsub.s32 0, %v1480
    %v1482 = vrot.slane %v1477, %v1481
    %v1500 = vunpack.c.l.b16 %v1461
    %v1501 = vunpack.c.l.b16 %v1462
    %v1502 = vunpack.c.l.b16 %v1463
    %v1503 = vunpack.c.l.b16 %v1464
    %v1504 = vunpack.c.l.b16 %v1465
    %v1505 = vunpack.c.l.b16 %v1466
    %v1506 = vunpack.c.l.b16 %v1467
    %v1507 = vunpack.c.l.b16 %v1468
    %v1508 = vunpack.c.l.b16 %v1469
    %v1509 = vunpack.c.l.b16 %v1470
    %v1510 = vunpack.c.l.b16 %v1471
    %v1511 = vunpack.c.l.b16 %v1472
    %v1512 = vunpack.c.l.b16 %v1473
    %v1513 = vunpack.c.l.b16 %v1474
    %v1514 = vunpack.c.l.b16 %v1475
    %v1515 = vunpack.c.l.b16 %v1476
    %v1516 = vpack.c.b16 %v1501, %v1500
    %v1517 = vpack.c.b16 %v1503, %v1502
    %v1518 = vpack.c.b16 %v1505, %v1504
    %v1519 = vpack.c.b16 %v1507, %v1506
    %v1520 = vpack.c.b16 %v1509, %v1508
    %v1521 = vpack.c.b16 %v1511, %v1510
    %v1522 = vpack.c.b16 %v1513, %v1512
    %v1523 = vpack.c.b16 %v1515, %v1514
    %1532 = vmatprep.subr.bf16.mxu0 0
    %1533 = vmatpush1.bf16.msra.mxu0 %v1516
    %1534 = vmatprep.subr.bf16.mxu0 0
    %1535 = vmatpush1.bf16.msra.mxu0 %v1517
    %1536 = vmatprep.subr.bf16.mxu0 0
    %1537 = vmatpush1.bf16.msra.mxu0 %v1518
    %1538 = vmatprep.subr.bf16.mxu0 0
    %1539 = vmatpush1.bf16.msra.mxu0 %v1519
    %1540 = vmatprep.subr.bf16.mxu0 0
    %1541 = vmatpush1.bf16.msra.mxu0 %v1520
    %1542 = vmatprep.subr.bf16.mxu0 0
    %1543 = vmatpush1.bf16.msra.mxu0 %v1521
    %1544 = vmatprep.subr.bf16.mxu0 0
    %1545 = vmatpush1.bf16.msra.mxu0 %v1522
    %1546 = vmatprep.subr.bf16.mxu0 0
    %1547 = vmatpush1.bf16.msra.mxu0 %v1523
    %1548 = vmatprep.subr.bf16.mxu0 0
    %1549 = vmatpush1.bf16.msra.mxu0 0
    %1550 = vmatprep.subr.bf16.mxu0 0
    %1551 = vmatpush1.bf16.msra.mxu0 0
    %1552 = vmatprep.subr.bf16.mxu0 0
    %1553 = vmatpush1.bf16.msra.mxu0 0
    %1554 = vmatprep.subr.bf16.mxu0 0
    %1555 = vmatpush1.bf16.msra.mxu0 0
    %1556 = vmatprep.subr.bf16.mxu0 0
    %1557 = vmatpush1.bf16.msra.mxu0 0
    %1558 = vmatprep.subr.bf16.mxu0 0
    %1559 = vmatpush1.bf16.msra.mxu0 0
    %1560 = vmatprep.subr.bf16.mxu0 0
    %1561 = vmatpush1.bf16.msra.mxu0 0
    %1562 = vmatprep.subr.bf16.mxu0 0
    %1563 = vmatpush1.bf16.msra.mxu0 0
    %1564 = vmatprep.mubr.bf16.mxu0 0
    %1565 = vmatmul.mubr.bf16.gmra.mrb[0].mxu0 %v1460
    %v1566 = vpop.f32.mrb[0].mxu0
    %v1567 = vadd.f32 %v1482, %v1566
    %v1568 = vpop.f32.mrb[0].mxu0
    %v1569 = vpop.f32.mrb[0].mxu0
    %v1570 = vpop.f32.mrb[0].mxu0
    %1571 = vdwg.mxu0
    %1572 = vst [vmem:[#allocation14] sm:$0xff] %v1567
    // Predicated region
    $region86: #{decoder_forward.1} parent=1 // pred_check
      _
    $region87: #{decoder_forward.1} parent=1 // pred_check_branch
      %1574 = sbr.rel (0) target = $region89
    $region88: #{decoder_forward.1} parent=1 // pred_region
      %s1576 = ssub.s32 128, 128
      %1577 = vsyncadd [#allocation6], %s1576
      %s1579 = sshll.u32 [#allocation14], 4
      %s1580 = int_to_ptr.vmem [resolvable:$true] %s1579
      %1582 = dma.vmem_to_hbm [thread:$0]  %s1580, 128, %s9, [#allocation6]
    $region89: #{decoder_forward.1} parent=1 // pred_fallthru
      _
    // Predicated region
    $region90: #{decoder_forward.1} parent=1 // pred_check
      _
    $region91: #{decoder_forward.1} parent=1 // pred_check_branch
      %1584 = sbr.rel (0) target = $region93
    $region92: #{decoder_forward.1} parent=1 // pred_region
      _
    $region93: #{decoder_forward.1} parent=1 // pred_fallthru
      _
    // Predicated region
    $region94: #{decoder_forward.1} parent=1 // pred_check
      _
    $region95: #{decoder_forward.1} parent=1 // pred_check_branch
      %1586 = sbr.rel (0) target = $region97
    $region96: #{decoder_forward.1} parent=1 // pred_region
      _
    $region97: #{decoder_forward.1} parent=1 // pred_fallthru
      _
    // Predicated region
    $region98: #{decoder_forward.1} parent=1 // pred_check
      _
    $region99: #{decoder_forward.1} parent=1 // pred_check_branch
      %1588 = sbr.rel (0) target = $region101
    $region100: #{decoder_forward.1} parent=1 // pred_region
      %1589 = dma.done [#allocation6], 128
    $region101: #{decoder_forward.1} parent=1 // pred_fallthru
      _
    // Predicated region
    $region102: #{decoder_forward.1} parent=1 // pred_check
      _
    $region103: #{decoder_forward.1} parent=1 // pred_check_branch
      %1591 = sbr.rel (0) target = $region105
    $region104: #{decoder_forward.1} parent=1 // pred_region
      _
    $region105: #{decoder_forward.1} parent=1 // pred_fallthru
      _
    // Predicated region
    $region106: #{decoder_forward.1} parent=1 // pred_check
      _
    $region107: #{decoder_forward.1} parent=1 // pred_check_branch
      %1593 = sbr.rel (0) target = $region109
    $region108: #{decoder_forward.1} parent=1 // pred_region
      _
    $region109: #{decoder_forward.1} parent=1 // pred_fallthru
      _
    %1594 = vsyncpa [#allocation5], 1
    %1595 = vsyncpa [#allocation10], 1
    %1596 = vsyncpa [#allocation13], 1
    %1597 = vsyncpa [#allocation6], 1
    %1598 = vsyncpa [#allocation7], 1
  %1599 = vsyncmov [#allocation3]
  %s1600 = vpop.sfrf %1599
  %p1601 = scmp.eq.s32.totalorder %s1600, 0
  %p1602 = pneg %p1601
  %1604 = shalt.err (%p1602)
  %s1605 = scalar_lea.sflag [#allocation3], 1
  %1606 = vsyncmov %s1605
  %s1607 = vpop.sfrf %1606
  %p1608 = scmp.eq.s32.totalorder %s1607, 0
  %p1609 = pneg %p1608
  %1611 = shalt.err (%p1609)
  %s1612 = scalar_lea.sflag [#allocation3], 2
  %1613 = vsyncmov %s1612
  %s1614 = vpop.sfrf %1613
  %p1615 = scmp.eq.s32.totalorder %s1614, 0
  %p1616 = pneg %p1615
  %1618 = shalt.err (%p1616)
  %s1619 = scalar_lea.sflag [#allocation3], 3
  %1620 = vsyncmov %s1619
  %s1621 = vpop.sfrf %1620
  %p1622 = scmp.eq.s32.totalorder %s1621, 0
  %p1623 = pneg %p1622
  %1625 = shalt.err (%p1623)
  %s1626 = scalar_lea.sflag [#allocation3], 4
  %1627 = vsyncmov %s1626
  %s1628 = vpop.sfrf %1627
  %p1629 = scmp.eq.s32.totalorder %s1628, 0
  %p1630 = pneg %p1629
  %1632 = shalt.err (%p1630)
  %s1633 = scalar_lea.sflag [#allocation3], 5
  %1634 = vsyncmov %s1633
  %s1635 = vpop.sfrf %1634
  %p1636 = scmp.eq.s32.totalorder %s1635, 0
  %p1637 = pneg %p1636
  %1639 = shalt.err (%p1637)
  %s1640 = scalar_lea.sflag [#allocation3], 6
  %1641 = vsyncmov %s1640
  %s1642 = vpop.sfrf %1641
  %p1643 = scmp.eq.s32.totalorder %s1642, 0
  %p1644 = pneg %p1643
  %1646 = shalt.err (%p1644)
  %s1647 = scalar_lea.sflag [#allocation3], 7
  %1648 = vsyncmov %s1647
  %s1649 = vpop.sfrf %1648
  %p1650 = scmp.eq.s32.totalorder %s1649, 0
  %p1651 = pneg %p1650
  %1653 = shalt.err (%p1651)

</llo_original>
